<compile_context>
chip_gen: v7x
topology: tpu7x:2x2x1
jax: 0.10.0
libtpu: 0.0.40
codegen_flags: <defaults>
</compile_context>

<pallas_src>
import functools

import jax
import jax.numpy as jnp
from jax.experimental import pallas as pl
from jax.experimental.pallas import tpu as pltpu

CHUNK_B = 128       # rows per within-tile pipeline chunk (== one 128-lane output slab)
ISSUE_UNROLL = 8    # manual unroll factor for the DMA-issue loop


def _mf_kernel(user_idx_ref, item_idx_ref,      # SMEM [B_pad] int32 (scalar prefetch)
               user_tab_ref, item_tab_ref,      # HBM refs (memory_space=pl.ANY)
               out_ref,                         # VMEM [1, 1, TILE_B] f32
               u_rows, i_rows, sem,             # VMEM (TILE_B, D) x2, DMA sems (2, n_chunks)
               *, apply_sigmoid, n_chunks):
    tile_b = n_chunks * CHUNK_B
    tile_base = pl.program_id(0) * tile_b

    def issue_chunk(c):                         # c is a static Python int
        c0 = c * CHUNK_B

        @pl.loop(0, CHUNK_B // ISSUE_UNROLL)
        def _issue(g):
            r0 = c0 + g * ISSUE_UNROLL
            for u in range(ISSUE_UNROLL):       # manual partial unroll -> scheduler visibility
                r = r0 + u
                uid = user_idx_ref[tile_base + r]
                iid = item_idx_ref[tile_base + r]
                pltpu.make_async_copy(user_tab_ref.at[uid], u_rows.at[r], sem.at[0, c]).start()
                pltpu.make_async_copy(item_tab_ref.at[iid], i_rows.at[r], sem.at[1, c]).start()

    def wait_chunk(c):
        # Single total-size wait per (table, chunk) semaphore: the dummy descriptor over the
        # chunk's scratch slice has exactly CHUNK_B * D * itemsize bytes == the summed bytes of
        # the CHUNK_B row copies issued on that semaphore.
        c0 = c * CHUNK_B
        u_view = u_rows.at[c0:c0 + CHUNK_B]
        i_view = i_rows.at[c0:c0 + CHUNK_B]
        pltpu.make_async_copy(u_view, u_view, sem.at[0, c]).wait()
        pltpu.make_async_copy(i_view, i_view, sem.at[1, c]).wait()

    issue_chunk(0)
    for c in range(n_chunks):
        if c + 1 < n_chunks:
            issue_chunk(c + 1)   # overlap next chunk's HBM gather with this chunk's wait/compute
        wait_chunk(c)
        c0 = c * CHUNK_B
        u = u_rows[c0:c0 + CHUNK_B, :].astype(jnp.float32)
        v = i_rows[c0:c0 + CHUNK_B, :].astype(jnp.float32)
        scores = jnp.sum(u * v, axis=-1)        # VPU multiply + XLU lane reduce, [CHUNK_B]
        if apply_sigmoid:
            scores = jax.nn.sigmoid(scores)     # EUP slot — effectively free in-kernel
        out_ref[0, 0, c0:c0 + CHUNK_B] = scores


def _pick_tile_b(B):
    """Lane-dense tile (multiple of CHUNK_B).  Prefer >= 2 grid steps (v7x megacore) when B
    allows it; cap at 512 rows/step (4-deep chunk pipeline, amortizes ~0.35us/step overhead)."""
    if B <= CHUNK_B:
        return CHUNK_B
    if B <= 8 * CHUNK_B:
        return max(CHUNK_B, pl.cdiv(pl.cdiv(B, 2), CHUNK_B) * CHUNK_B)
    return 4 * CHUNK_B


def _mf_pallas(user, item, user_table, item_table, *, apply_sigmoid):
    assert user_table.shape[1] == item_table.shape[1]
    orig_shape = user.shape
    user = user.reshape(-1)
    item = item.reshape(-1)
    B = int(user.shape[0])
    D = int(user_table.shape[1])

    tile_b = _pick_tile_b(B)
    n_chunks = tile_b // CHUNK_B
    num_tiles = pl.cdiv(B, tile_b)
    B_pad = num_tiles * tile_b

    # Hoisted, vectorized clamp (out-of-range ids read a clamped row instead of faulting) and
    # tail padding with id 0 -> every in-kernel gather address is in range; the kernel issue
    # loop is SMEM load + descriptor start only.
    user_ids = jnp.clip(user.astype(jnp.int32), 0, user_table.shape[0] - 1)
    item_ids = jnp.clip(item.astype(jnp.int32), 0, item_table.shape[0] - 1)
    user_ids = jnp.pad(user_ids, (0, B_pad - B))
    item_ids = jnp.pad(item_ids, (0, B_pad - B))

    kernel = functools.partial(_mf_kernel, apply_sigmoid=apply_sigmoid, n_chunks=n_chunks)
    out = pl.pallas_call(
        kernel,
        out_shape=jax.ShapeDtypeStruct((num_tiles, 1, tile_b), jnp.float32),
        grid_spec=pltpu.PrefetchScalarGridSpec(
            num_scalar_prefetch=2,
            grid=(num_tiles,),
            in_specs=[pl.BlockSpec(memory_space=pl.ANY),    # user table stays in HBM
                      pl.BlockSpec(memory_space=pl.ANY)],   # item table stays in HBM
            out_specs=pl.BlockSpec((1, 1, tile_b), lambda b, uids, iids: (b, 0, 0)),
            scratch_shapes=[pltpu.VMEM((tile_b, D), user_table.dtype),
                            pltpu.VMEM((tile_b, D), item_table.dtype),
                            pltpu.SemaphoreType.DMA((2, n_chunks))]),
        compiler_params=pltpu.CompilerParams(
            dimension_semantics=("parallel",)),
    )(user_ids, item_ids, user_table, item_table)
    return out.reshape(B_pad)[:B].reshape(orig_shape)


def mf_forward(user, item, user_table, item_table):
    """Pallas equivalent of MatrixFactorizationRatingPrediction.forward."""
    return _mf_pallas(user, item, user_table, item_table, apply_sigmoid=False)


def mf_predict(user, item, user_table, item_table):
    """Pallas equivalent of .predict() — sigmoid fused into the kernel epilogue."""
    return _mf_pallas(user, item, user_table, item_table, apply_sigmoid=True)


if __name__ == "__main__":
    num_users, num_items, embedding_dim = 64, 128, 32

    key = jax.random.PRNGKey(0)
    k_u, k_i, k_uid, k_iid, k_uid2, k_iid2 = jax.random.split(key, 6)

    # nn.Embedding default init: N(0, 1)
    user_table = jax.random.normal(k_u, (num_users, embedding_dim), dtype=jnp.float32)
    item_table = jax.random.normal(k_i, (num_items, embedding_dim), dtype=jnp.float32)

    # --- small batch: single tile, single chunk ---
    batch = 8
    user = jax.random.randint(k_uid, (batch,), 0, num_users, dtype=jnp.int32)
    item = jax.random.randint(k_iid, (batch,), 0, num_items, dtype=jnp.int32)

    out = jax.block_until_ready(mf_forward(user, item, user_table, item_table))
    ref = jnp.sum(user_table[user] * item_table[item], axis=-1)
    assert out.shape == (batch,)
    assert jnp.allclose(out, ref, atol=1e-5, rtol=1e-5)

    pred = jax.block_until_ready(mf_predict(user, item, user_table, item_table))
    assert jnp.allclose(pred, jax.nn.sigmoid(ref), atol=1e-5, rtol=1e-5)

    # --- larger batch: exercises multi-tile grid + within-tile chunked gather pipeline ---
    batch2 = 300
    user2 = jax.random.randint(k_uid2, (batch2,), 0, num_users, dtype=jnp.int32)
    item2 = jax.random.randint(k_iid2, (batch2,), 0, num_items, dtype=jnp.int32)

    out2 = jax.block_until_ready(mf_forward(user2, item2, user_table, item_table))
    ref2 = jnp.sum(user_table[user2] * item_table[item2], axis=-1)
    assert out2.shape == (batch2,)
    assert jnp.allclose(out2, ref2, atol=1e-5, rtol=1e-5)

    print("KERNEL_OK")
</pallas_src>

<mosaic_0001>
module attributes {stable_mosaic.version = 11 : i64} {
  func.func @_mf_kernel(%arg0: i32, %arg1: memref<128xi32, #tpu.memory_space<smem>>, %arg2: memref<128xi32, #tpu.memory_space<smem>>, %arg3: memref<64x32xf32, #tpu.memory_space<any>>, %arg4: memref<128x32xf32, #tpu.memory_space<any>>, %arg5: memref<1x1x128xf32, #tpu.memory_space<vmem>>, %arg6: memref<128x32xf32, #tpu.memory_space<vmem>>, %arg7: memref<128x32xf32, #tpu.memory_space<vmem>>, %arg8: memref<2x1x!tpu.dma_semaphore, #tpu.memory_space<semaphore_mem>>) attributes {dimension_semantics = [#tpu.dimension_semantics<parallel>], iteration_bounds = array<i64: 1>, scalar_prefetch = 2 : i64, scratch_operands = 3 : i64, tpu.core_type = #tpu.core_type<tc>, window_params = [{}, {}, {transform_indices = @transform_2, window_bounds = array<i64: 1, 1, 128>}]} {
    %c128_i32 = arith.constant 128 : i32
    %0 = arith.muli %arg0, %c128_i32 : i32
    %c0_i32 = arith.constant 0 : i32
    %c16_i32 = arith.constant 16 : i32
    %1 = arith.addi %c0_i32, %c16_i32 : i32
    %c1_i32 = arith.constant 1 : i32
    scf.for %arg9 = %c0_i32 to %1 step %c1_i32  : i32 {
      %c1_i32_19 = arith.constant 1 : i32
      %17 = arith.muli %arg9, %c1_i32_19 : i32
      %c0_i32_20 = arith.constant 0 : i32
      %18 = arith.addi %c0_i32_20, %17 : i32
      %c8_i32 = arith.constant 8 : i32
      %19 = arith.muli %18, %c8_i32 : i32
      %c0_i32_21 = arith.constant 0 : i32
      %20 = arith.addi %c0_i32_21, %19 : i32
      %c0_i32_22 = arith.constant 0 : i32
      %21 = arith.addi %20, %c0_i32_22 : i32
      %22 = arith.addi %0, %21 : i32
      %23 = arith.index_cast %22 : i32 to index
      %24 = memref.load %arg1[%23] : memref<128xi32, #tpu.memory_space<smem>>
      %25 = arith.addi %0, %21 : i32
      %26 = arith.index_cast %25 : i32 to index
      %27 = memref.load %arg2[%26] : memref<128xi32, #tpu.memory_space<smem>>
      %c0_i32_23 = arith.constant 0 : i32
      %c0_i32_24 = arith.constant 0 : i32
      %c0_i32_25 = arith.constant 0 : i32
      %28 = tpu.memref_slice %arg3[%24, %c0_i32_25] : memref<64x32xf32, #tpu.memory_space<any>> -> memref<1x32xf32, #tpu.memory_space<any>>
      %29 = tpu.memref_squeeze %28 : memref<1x32xf32, #tpu.memory_space<any>> -> memref<32xf32, #tpu.memory_space<any>>
      %c0_i32_26 = arith.constant 0 : i32
      %30 = tpu.memref_slice %arg6[%21, %c0_i32_26] : memref<128x32xf32, #tpu.memory_space<vmem>> -> memref<1x32xf32, #tpu.memory_space<vmem>>
      %31 = tpu.memref_squeeze %30 : memref<1x32xf32, #tpu.memory_space<vmem>> -> memref<32xf32, #tpu.memory_space<vmem>>
      %32 = tpu.memref_slice %arg8[%c0_i32_23, %c0_i32_24] : memref<2x1x!tpu.dma_semaphore, #tpu.memory_space<semaphore_mem>> -> memref<1x1x!tpu.dma_semaphore, #tpu.memory_space<semaphore_mem>>
      %33 = tpu.memref_squeeze %32 : memref<1x1x!tpu.dma_semaphore, #tpu.memory_space<semaphore_mem>> -> memref<!tpu.dma_semaphore, #tpu.memory_space<semaphore_mem>>
      tpu.enqueue_dma source(%29 : memref<32xf32, #tpu.memory_space<any>>) target(%31 : memref<32xf32, #tpu.memory_space<vmem>>) target_semaphore(%33 : memref<!tpu.dma_semaphore, #tpu.memory_space<semaphore_mem>>)
      %c1_i32_27 = arith.constant 1 : i32
      %c0_i32_28 = arith.constant 0 : i32
      %c0_i32_29 = arith.constant 0 : i32
      %34 = tpu.memref_slice %arg4[%27, %c0_i32_29] : memref<128x32xf32, #tpu.memory_space<any>> -> memref<1x32xf32, #tpu.memory_space<any>>
      %35 = tpu.memref_squeeze %34 : memref<1x32xf32, #tpu.memory_space<any>> -> memref<32xf32, #tpu.memory_space<any>>
      %c0_i32_30 = arith.constant 0 : i32
      %36 = tpu.memref_slice %arg7[%21, %c0_i32_30] : memref<128x32xf32, #tpu.memory_space<vmem>> -> memref<1x32xf32, #tpu.memory_space<vmem>>
      %37 = tpu.memref_squeeze %36 : memref<1x32xf32, #tpu.memory_space<vmem>> -> memref<32xf32, #tpu.memory_space<vmem>>
      %38 = tpu.memref_slice %arg8[%c1_i32_27, %c0_i32_28] : memref<2x1x!tpu.dma_semaphore, #tpu.memory_space<semaphore_mem>> -> memref<1x1x!tpu.dma_semaphore, #tpu.memory_space<semaphore_mem>>
      %39 = tpu.memref_squeeze %38 : memref<1x1x!tpu.dma_semaphore, #tpu.memory_space<semaphore_mem>> -> memref<!tpu.dma_semaphore, #tpu.memory_space<semaphore_mem>>
      tpu.enqueue_dma source(%35 : memref<32xf32, #tpu.memory_space<any>>) target(%37 : memref<32xf32, #tpu.memory_space<vmem>>) target_semaphore(%39 : memref<!tpu.dma_semaphore, #tpu.memory_space<semaphore_mem>>)
      %c1_i32_31 = arith.constant 1 : i32
      %40 = arith.addi %20, %c1_i32_31 : i32
      %41 = arith.addi %0, %40 : i32
      %42 = arith.index_cast %41 : i32 to index
      %43 = memref.load %arg1[%42] : memref<128xi32, #tpu.memory_space<smem>>
      %44 = arith.addi %0, %40 : i32
      %45 = arith.index_cast %44 : i32 to index
      %46 = memref.load %arg2[%45] : memref<128xi32, #tpu.memory_space<smem>>
      %c0_i32_32 = arith.constant 0 : i32
      %c0_i32_33 = arith.constant 0 : i32
      %c0_i32_34 = arith.constant 0 : i32
      %47 = tpu.memref_slice %arg3[%43, %c0_i32_34] : memref<64x32xf32, #tpu.memory_space<any>> -> memref<1x32xf32, #tpu.memory_space<any>>
      %48 = tpu.memref_squeeze %47 : memref<1x32xf32, #tpu.memory_space<any>> -> memref<32xf32, #tpu.memory_space<any>>
      %c0_i32_35 = arith.constant 0 : i32
      %49 = tpu.memref_slice %arg6[%40, %c0_i32_35] : memref<128x32xf32, #tpu.memory_space<vmem>> -> memref<1x32xf32, #tpu.memory_space<vmem>>
      %50 = tpu.memref_squeeze %49 : memref<1x32xf32, #tpu.memory_space<vmem>> -> memref<32xf32, #tpu.memory_space<vmem>>
      %51 = tpu.memref_slice %arg8[%c0_i32_32, %c0_i32_33] : memref<2x1x!tpu.dma_semaphore, #tpu.memory_space<semaphore_mem>> -> memref<1x1x!tpu.dma_semaphore, #tpu.memory_space<semaphore_mem>>
      %52 = tpu.memref_squeeze %51 : memref<1x1x!tpu.dma_semaphore, #tpu.memory_space<semaphore_mem>> -> memref<!tpu.dma_semaphore, #tpu.memory_space<semaphore_mem>>
      tpu.enqueue_dma source(%48 : memref<32xf32, #tpu.memory_space<any>>) target(%50 : memref<32xf32, #tpu.memory_space<vmem>>) target_semaphore(%52 : memref<!tpu.dma_semaphore, #tpu.memory_space<semaphore_mem>>)
      %c1_i32_36 = arith.constant 1 : i32
      %c0_i32_37 = arith.constant 0 : i32
      %c0_i32_38 = arith.constant 0 : i32
      %53 = tpu.memref_slice %arg4[%46, %c0_i32_38] : memref<128x32xf32, #tpu.memory_space<any>> -> memref<1x32xf32, #tpu.memory_space<any>>
      %54 = tpu.memref_squeeze %53 : memref<1x32xf32, #tpu.memory_space<any>> -> memref<32xf32, #tpu.memory_space<any>>
      %c0_i32_39 = arith.constant 0 : i32
      %55 = tpu.memref_slice %arg7[%40, %c0_i32_39] : memref<128x32xf32, #tpu.memory_space<vmem>> -> memref<1x32xf32, #tpu.memory_space<vmem>>
      %56 = tpu.memref_squeeze %55 : memref<1x32xf32, #tpu.memory_space<vmem>> -> memref<32xf32, #tpu.memory_space<vmem>>
      %57 = tpu.memref_slice %arg8[%c1_i32_36, %c0_i32_37] : memref<2x1x!tpu.dma_semaphore, #tpu.memory_space<semaphore_mem>> -> memref<1x1x!tpu.dma_semaphore, #tpu.memory_space<semaphore_mem>>
      %58 = tpu.memref_squeeze %57 : memref<1x1x!tpu.dma_semaphore, #tpu.memory_space<semaphore_mem>> -> memref<!tpu.dma_semaphore, #tpu.memory_space<semaphore_mem>>
      tpu.enqueue_dma source(%54 : memref<32xf32, #tpu.memory_space<any>>) target(%56 : memref<32xf32, #tpu.memory_space<vmem>>) target_semaphore(%58 : memref<!tpu.dma_semaphore, #tpu.memory_space<semaphore_mem>>)
      %c2_i32 = arith.constant 2 : i32
      %59 = arith.addi %20, %c2_i32 : i32
      %60 = arith.addi %0, %59 : i32
      %61 = arith.index_cast %60 : i32 to index
      %62 = memref.load %arg1[%61] : memref<128xi32, #tpu.memory_space<smem>>
      %63 = arith.addi %0, %59 : i32
      %64 = arith.index_cast %63 : i32 to index
      %65 = memref.load %arg2[%64] : memref<128xi32, #tpu.memory_space<smem>>
      %c0_i32_40 = arith.constant 0 : i32
      %c0_i32_41 = arith.constant 0 : i32
      %c0_i32_42 = arith.constant 0 : i32
      %66 = tpu.memref_slice %arg3[%62, %c0_i32_42] : memref<64x32xf32, #tpu.memory_space<any>> -> memref<1x32xf32, #tpu.memory_space<any>>
      %67 = tpu.memref_squeeze %66 : memref<1x32xf32, #tpu.memory_space<any>> -> memref<32xf32, #tpu.memory_space<any>>
      %c0_i32_43 = arith.constant 0 : i32
      %68 = tpu.memref_slice %arg6[%59, %c0_i32_43] : memref<128x32xf32, #tpu.memory_space<vmem>> -> memref<1x32xf32, #tpu.memory_space<vmem>>
      %69 = tpu.memref_squeeze %68 : memref<1x32xf32, #tpu.memory_space<vmem>> -> memref<32xf32, #tpu.memory_space<vmem>>
      %70 = tpu.memref_slice %arg8[%c0_i32_40, %c0_i32_41] : memref<2x1x!tpu.dma_semaphore, #tpu.memory_space<semaphore_mem>> -> memref<1x1x!tpu.dma_semaphore, #tpu.memory_space<semaphore_mem>>
      %71 = tpu.memref_squeeze %70 : memref<1x1x!tpu.dma_semaphore, #tpu.memory_space<semaphore_mem>> -> memref<!tpu.dma_semaphore, #tpu.memory_space<semaphore_mem>>
      tpu.enqueue_dma source(%67 : memref<32xf32, #tpu.memory_space<any>>) target(%69 : memref<32xf32, #tpu.memory_space<vmem>>) target_semaphore(%71 : memref<!tpu.dma_semaphore, #tpu.memory_space<semaphore_mem>>)
      %c1_i32_44 = arith.constant 1 : i32
      %c0_i32_45 = arith.constant 0 : i32
      %c0_i32_46 = arith.constant 0 : i32
      %72 = tpu.memref_slice %arg4[%65, %c0_i32_46] : memref<128x32xf32, #tpu.memory_space<any>> -> memref<1x32xf32, #tpu.memory_space<any>>
      %73 = tpu.memref_squeeze %72 : memref<1x32xf32, #tpu.memory_space<any>> -> memref<32xf32, #tpu.memory_space<any>>
      %c0_i32_47 = arith.constant 0 : i32
      %74 = tpu.memref_slice %arg7[%59, %c0_i32_47] : memref<128x32xf32, #tpu.memory_space<vmem>> -> memref<1x32xf32, #tpu.memory_space<vmem>>
      %75 = tpu.memref_squeeze %74 : memref<1x32xf32, #tpu.memory_space<vmem>> -> memref<32xf32, #tpu.memory_space<vmem>>
      %76 = tpu.memref_slice %arg8[%c1_i32_44, %c0_i32_45] : memref<2x1x!tpu.dma_semaphore, #tpu.memory_space<semaphore_mem>> -> memref<1x1x!tpu.dma_semaphore, #tpu.memory_space<semaphore_mem>>
      %77 = tpu.memref_squeeze %76 : memref<1x1x!tpu.dma_semaphore, #tpu.memory_space<semaphore_mem>> -> memref<!tpu.dma_semaphore, #tpu.memory_space<semaphore_mem>>
      tpu.enqueue_dma source(%73 : memref<32xf32, #tpu.memory_space<any>>) target(%75 : memref<32xf32, #tpu.memory_space<vmem>>) target_semaphore(%77 : memref<!tpu.dma_semaphore, #tpu.memory_space<semaphore_mem>>)
      %c3_i32 = arith.constant 3 : i32
      %78 = arith.addi %20, %c3_i32 : i32
      %79 = arith.addi %0, %78 : i32
      %80 = arith.index_cast %79 : i32 to index
      %81 = memref.load %arg1[%80] : memref<128xi32, #tpu.memory_space<smem>>
      %82 = arith.addi %0, %78 : i32
      %83 = arith.index_cast %82 : i32 to index
      %84 = memref.load %arg2[%83] : memref<128xi32, #tpu.memory_space<smem>>
      %c0_i32_48 = arith.constant 0 : i32
      %c0_i32_49 = arith.constant 0 : i32
      %c0_i32_50 = arith.constant 0 : i32
      %85 = tpu.memref_slice %arg3[%81, %c0_i32_50] : memref<64x32xf32, #tpu.memory_space<any>> -> memref<1x32xf32, #tpu.memory_space<any>>
      %86 = tpu.memref_squeeze %85 : memref<1x32xf32, #tpu.memory_space<any>> -> memref<32xf32, #tpu.memory_space<any>>
      %c0_i32_51 = arith.constant 0 : i32
      %87 = tpu.memref_slice %arg6[%78, %c0_i32_51] : memref<128x32xf32, #tpu.memory_space<vmem>> -> memref<1x32xf32, #tpu.memory_space<vmem>>
      %88 = tpu.memref_squeeze %87 : memref<1x32xf32, #tpu.memory_space<vmem>> -> memref<32xf32, #tpu.memory_space<vmem>>
      %89 = tpu.memref_slice %arg8[%c0_i32_48, %c0_i32_49] : memref<2x1x!tpu.dma_semaphore, #tpu.memory_space<semaphore_mem>> -> memref<1x1x!tpu.dma_semaphore, #tpu.memory_space<semaphore_mem>>
      %90 = tpu.memref_squeeze %89 : memref<1x1x!tpu.dma_semaphore, #tpu.memory_space<semaphore_mem>> -> memref<!tpu.dma_semaphore, #tpu.memory_space<semaphore_mem>>
      tpu.enqueue_dma source(%86 : memref<32xf32, #tpu.memory_space<any>>) target(%88 : memref<32xf32, #tpu.memory_space<vmem>>) target_semaphore(%90 : memref<!tpu.dma_semaphore, #tpu.memory_space<semaphore_mem>>)
      %c1_i32_52 = arith.constant 1 : i32
      %c0_i32_53 = arith.constant 0 : i32
      %c0_i32_54 = arith.constant 0 : i32
      %91 = tpu.memref_slice %arg4[%84, %c0_i32_54] : memref<128x32xf32, #tpu.memory_space<any>> -> memref<1x32xf32, #tpu.memory_space<any>>
      %92 = tpu.memref_squeeze %91 : memref<1x32xf32, #tpu.memory_space<any>> -> memref<32xf32, #tpu.memory_space<any>>
      %c0_i32_55 = arith.constant 0 : i32
      %93 = tpu.memref_slice %arg7[%78, %c0_i32_55] : memref<128x32xf32, #tpu.memory_space<vmem>> -> memref<1x32xf32, #tpu.memory_space<vmem>>
      %94 = tpu.memref_squeeze %93 : memref<1x32xf32, #tpu.memory_space<vmem>> -> memref<32xf32, #tpu.memory_space<vmem>>
      %95 = tpu.memref_slice %arg8[%c1_i32_52, %c0_i32_53] : memref<2x1x!tpu.dma_semaphore, #tpu.memory_space<semaphore_mem>> -> memref<1x1x!tpu.dma_semaphore, #tpu.memory_space<semaphore_mem>>
      %96 = tpu.memref_squeeze %95 : memref<1x1x!tpu.dma_semaphore, #tpu.memory_space<semaphore_mem>> -> memref<!tpu.dma_semaphore, #tpu.memory_space<semaphore_mem>>
      tpu.enqueue_dma source(%92 : memref<32xf32, #tpu.memory_space<any>>) target(%94 : memref<32xf32, #tpu.memory_space<vmem>>) target_semaphore(%96 : memref<!tpu.dma_semaphore, #tpu.memory_space<semaphore_mem>>)
      %c4_i32 = arith.constant 4 : i32
      %97 = arith.addi %20, %c4_i32 : i32
      %98 = arith.addi %0, %97 : i32
      %99 = arith.index_cast %98 : i32 to index
      %100 = memref.load %arg1[%99] : memref<128xi32, #tpu.memory_space<smem>>
      %101 = arith.addi %0, %97 : i32
      %102 = arith.index_cast %101 : i32 to index
      %103 = memref.load %arg2[%102] : memref<128xi32, #tpu.memory_space<smem>>
      %c0_i32_56 = arith.constant 0 : i32
      %c0_i32_57 = arith.constant 0 : i32
      %c0_i32_58 = arith.constant 0 : i32
      %104 = tpu.memref_slice %arg3[%100, %c0_i32_58] : memref<64x32xf32, #tpu.memory_space<any>> -> memref<1x32xf32, #tpu.memory_space<any>>
      %105 = tpu.memref_squeeze %104 : memref<1x32xf32, #tpu.memory_space<any>> -> memref<32xf32, #tpu.memory_space<any>>
      %c0_i32_59 = arith.constant 0 : i32
      %106 = tpu.memref_slice %arg6[%97, %c0_i32_59] : memref<128x32xf32, #tpu.memory_space<vmem>> -> memref<1x32xf32, #tpu.memory_space<vmem>>
      %107 = tpu.memref_squeeze %106 : memref<1x32xf32, #tpu.memory_space<vmem>> -> memref<32xf32, #tpu.memory_space<vmem>>
      %108 = tpu.memref_slice %arg8[%c0_i32_56, %c0_i32_57] : memref<2x1x!tpu.dma_semaphore, #tpu.memory_space<semaphore_mem>> -> memref<1x1x!tpu.dma_semaphore, #tpu.memory_space<semaphore_mem>>
      %109 = tpu.memref_squeeze %108 : memref<1x1x!tpu.dma_semaphore, #tpu.memory_space<semaphore_mem>> -> memref<!tpu.dma_semaphore, #tpu.memory_space<semaphore_mem>>
      tpu.enqueue_dma source(%105 : memref<32xf32, #tpu.memory_space<any>>) target(%107 : memref<32xf32, #tpu.memory_space<vmem>>) target_semaphore(%109 : memref<!tpu.dma_semaphore, #tpu.memory_space<semaphore_mem>>)
      %c1_i32_60 = arith.constant 1 : i32
      %c0_i32_61 = arith.constant 0 : i32
      %c0_i32_62 = arith.constant 0 : i32
      %110 = tpu.memref_slice %arg4[%103, %c0_i32_62] : memref<128x32xf32, #tpu.memory_space<any>> -> memref<1x32xf32, #tpu.memory_space<any>>
      %111 = tpu.memref_squeeze %110 : memref<1x32xf32, #tpu.memory_space<any>> -> memref<32xf32, #tpu.memory_space<any>>
      %c0_i32_63 = arith.constant 0 : i32
      %112 = tpu.memref_slice %arg7[%97, %c0_i32_63] : memref<128x32xf32, #tpu.memory_space<vmem>> -> memref<1x32xf32, #tpu.memory_space<vmem>>
      %113 = tpu.memref_squeeze %112 : memref<1x32xf32, #tpu.memory_space<vmem>> -> memref<32xf32, #tpu.memory_space<vmem>>
      %114 = tpu.memref_slice %arg8[%c1_i32_60, %c0_i32_61] : memref<2x1x!tpu.dma_semaphore, #tpu.memory_space<semaphore_mem>> -> memref<1x1x!tpu.dma_semaphore, #tpu.memory_space<semaphore_mem>>
      %115 = tpu.memref_squeeze %114 : memref<1x1x!tpu.dma_semaphore, #tpu.memory_space<semaphore_mem>> -> memref<!tpu.dma_semaphore, #tpu.memory_space<semaphore_mem>>
      tpu.enqueue_dma source(%111 : memref<32xf32, #tpu.memory_space<any>>) target(%113 : memref<32xf32, #tpu.memory_space<vmem>>) target_semaphore(%115 : memref<!tpu.dma_semaphore, #tpu.memory_space<semaphore_mem>>)
      %c5_i32 = arith.constant 5 : i32
      %116 = arith.addi %20, %c5_i32 : i32
      %117 = arith.addi %0, %116 : i32
      %118 = arith.index_cast %117 : i32 to index
      %119 = memref.load %arg1[%118] : memref<128xi32, #tpu.memory_space<smem>>
      %120 = arith.addi %0, %116 : i32
      %121 = arith.index_cast %120 : i32 to index
      %122 = memref.load %arg2[%121] : memref<128xi32, #tpu.memory_space<smem>>
      %c0_i32_64 = arith.constant 0 : i32
      %c0_i32_65 = arith.constant 0 : i32
      %c0_i32_66 = arith.constant 0 : i32
      %123 = tpu.memref_slice %arg3[%119, %c0_i32_66] : memref<64x32xf32, #tpu.memory_space<any>> -> memref<1x32xf32, #tpu.memory_space<any>>
      %124 = tpu.memref_squeeze %123 : memref<1x32xf32, #tpu.memory_space<any>> -> memref<32xf32, #tpu.memory_space<any>>
      %c0_i32_67 = arith.constant 0 : i32
      %125 = tpu.memref_slice %arg6[%116, %c0_i32_67] : memref<128x32xf32, #tpu.memory_space<vmem>> -> memref<1x32xf32, #tpu.memory_space<vmem>>
      %126 = tpu.memref_squeeze %125 : memref<1x32xf32, #tpu.memory_space<vmem>> -> memref<32xf32, #tpu.memory_space<vmem>>
      %127 = tpu.memref_slice %arg8[%c0_i32_64, %c0_i32_65] : memref<2x1x!tpu.dma_semaphore, #tpu.memory_space<semaphore_mem>> -> memref<1x1x!tpu.dma_semaphore, #tpu.memory_space<semaphore_mem>>
      %128 = tpu.memref_squeeze %127 : memref<1x1x!tpu.dma_semaphore, #tpu.memory_space<semaphore_mem>> -> memref<!tpu.dma_semaphore, #tpu.memory_space<semaphore_mem>>
      tpu.enqueue_dma source(%124 : memref<32xf32, #tpu.memory_space<any>>) target(%126 : memref<32xf32, #tpu.memory_space<vmem>>) target_semaphore(%128 : memref<!tpu.dma_semaphore, #tpu.memory_space<semaphore_mem>>)
      %c1_i32_68 = arith.constant 1 : i32
      %c0_i32_69 = arith.constant 0 : i32
      %c0_i32_70 = arith.constant 0 : i32
      %129 = tpu.memref_slice %arg4[%122, %c0_i32_70] : memref<128x32xf32, #tpu.memory_space<any>> -> memref<1x32xf32, #tpu.memory_space<any>>
      %130 = tpu.memref_squeeze %129 : memref<1x32xf32, #tpu.memory_space<any>> -> memref<32xf32, #tpu.memory_space<any>>
      %c0_i32_71 = arith.constant 0 : i32
      %131 = tpu.memref_slice %arg7[%116, %c0_i32_71] : memref<128x32xf32, #tpu.memory_space<vmem>> -> memref<1x32xf32, #tpu.memory_space<vmem>>
      %132 = tpu.memref_squeeze %131 : memref<1x32xf32, #tpu.memory_space<vmem>> -> memref<32xf32, #tpu.memory_space<vmem>>
      %133 = tpu.memref_slice %arg8[%c1_i32_68, %c0_i32_69] : memref<2x1x!tpu.dma_semaphore, #tpu.memory_space<semaphore_mem>> -> memref<1x1x!tpu.dma_semaphore, #tpu.memory_space<semaphore_mem>>
      %134 = tpu.memref_squeeze %133 : memref<1x1x!tpu.dma_semaphore, #tpu.memory_space<semaphore_mem>> -> memref<!tpu.dma_semaphore, #tpu.memory_space<semaphore_mem>>
      tpu.enqueue_dma source(%130 : memref<32xf32, #tpu.memory_space<any>>) target(%132 : memref<32xf32, #tpu.memory_space<vmem>>) target_semaphore(%134 : memref<!tpu.dma_semaphore, #tpu.memory_space<semaphore_mem>>)
      %c6_i32 = arith.constant 6 : i32
      %135 = arith.addi %20, %c6_i32 : i32
      %136 = arith.addi %0, %135 : i32
      %137 = arith.index_cast %136 : i32 to index
      %138 = memref.load %arg1[%137] : memref<128xi32, #tpu.memory_space<smem>>
      %139 = arith.addi %0, %135 : i32
      %140 = arith.index_cast %139 : i32 to index
      %141 = memref.load %arg2[%140] : memref<128xi32, #tpu.memory_space<smem>>
      %c0_i32_72 = arith.constant 0 : i32
      %c0_i32_73 = arith.constant 0 : i32
      %c0_i32_74 = arith.constant 0 : i32
      %142 = tpu.memref_slice %arg3[%138, %c0_i32_74] : memref<64x32xf32, #tpu.memory_space<any>> -> memref<1x32xf32, #tpu.memory_space<any>>
      %143 = tpu.memref_squeeze %142 : memref<1x32xf32, #tpu.memory_space<any>> -> memref<32xf32, #tpu.memory_space<any>>
      %c0_i32_75 = arith.constant 0 : i32
      %144 = tpu.memref_slice %arg6[%135, %c0_i32_75] : memref<128x32xf32, #tpu.memory_space<vmem>> -> memref<1x32xf32, #tpu.memory_space<vmem>>
      %145 = tpu.memref_squeeze %144 : memref<1x32xf32, #tpu.memory_space<vmem>> -> memref<32xf32, #tpu.memory_space<vmem>>
      %146 = tpu.memref_slice %arg8[%c0_i32_72, %c0_i32_73] : memref<2x1x!tpu.dma_semaphore, #tpu.memory_space<semaphore_mem>> -> memref<1x1x!tpu.dma_semaphore, #tpu.memory_space<semaphore_mem>>
      %147 = tpu.memref_squeeze %146 : memref<1x1x!tpu.dma_semaphore, #tpu.memory_space<semaphore_mem>> -> memref<!tpu.dma_semaphore, #tpu.memory_space<semaphore_mem>>
      tpu.enqueue_dma source(%143 : memref<32xf32, #tpu.memory_space<any>>) target(%145 : memref<32xf32, #tpu.memory_space<vmem>>) target_semaphore(%147 : memref<!tpu.dma_semaphore, #tpu.memory_space<semaphore_mem>>)
      %c1_i32_76 = arith.constant 1 : i32
      %c0_i32_77 = arith.constant 0 : i32
      %c0_i32_78 = arith.constant 0 : i32
      %148 = tpu.memref_slice %arg4[%141, %c0_i32_78] : memref<128x32xf32, #tpu.memory_space<any>> -> memref<1x32xf32, #tpu.memory_space<any>>
      %149 = tpu.memref_squeeze %148 : memref<1x32xf32, #tpu.memory_space<any>> -> memref<32xf32, #tpu.memory_space<any>>
      %c0_i32_79 = arith.constant 0 : i32
      %150 = tpu.memref_slice %arg7[%135, %c0_i32_79] : memref<128x32xf32, #tpu.memory_space<vmem>> -> memref<1x32xf32, #tpu.memory_space<vmem>>
      %151 = tpu.memref_squeeze %150 : memref<1x32xf32, #tpu.memory_space<vmem>> -> memref<32xf32, #tpu.memory_space<vmem>>
      %152 = tpu.memref_slice %arg8[%c1_i32_76, %c0_i32_77] : memref<2x1x!tpu.dma_semaphore, #tpu.memory_space<semaphore_mem>> -> memref<1x1x!tpu.dma_semaphore, #tpu.memory_space<semaphore_mem>>
      %153 = tpu.memref_squeeze %152 : memref<1x1x!tpu.dma_semaphore, #tpu.memory_space<semaphore_mem>> -> memref<!tpu.dma_semaphore, #tpu.memory_space<semaphore_mem>>
      tpu.enqueue_dma source(%149 : memref<32xf32, #tpu.memory_space<any>>) target(%151 : memref<32xf32, #tpu.memory_space<vmem>>) target_semaphore(%153 : memref<!tpu.dma_semaphore, #tpu.memory_space<semaphore_mem>>)
      %c7_i32 = arith.constant 7 : i32
      %154 = arith.addi %20, %c7_i32 : i32
      %155 = arith.addi %0, %154 : i32
      %156 = arith.index_cast %155 : i32 to index
      %157 = memref.load %arg1[%156] : memref<128xi32, #tpu.memory_space<smem>>
      %158 = arith.addi %0, %154 : i32
      %159 = arith.index_cast %158 : i32 to index
      %160 = memref.load %arg2[%159] : memref<128xi32, #tpu.memory_space<smem>>
      %c0_i32_80 = arith.constant 0 : i32
      %c0_i32_81 = arith.constant 0 : i32
      %c0_i32_82 = arith.constant 0 : i32
      %161 = tpu.memref_slice %arg3[%157, %c0_i32_82] : memref<64x32xf32, #tpu.memory_space<any>> -> memref<1x32xf32, #tpu.memory_space<any>>
      %162 = tpu.memref_squeeze %161 : memref<1x32xf32, #tpu.memory_space<any>> -> memref<32xf32, #tpu.memory_space<any>>
      %c0_i32_83 = arith.constant 0 : i32
      %163 = tpu.memref_slice %arg6[%154, %c0_i32_83] : memref<128x32xf32, #tpu.memory_space<vmem>> -> memref<1x32xf32, #tpu.memory_space<vmem>>
      %164 = tpu.memref_squeeze %163 : memref<1x32xf32, #tpu.memory_space<vmem>> -> memref<32xf32, #tpu.memory_space<vmem>>
      %165 = tpu.memref_slice %arg8[%c0_i32_80, %c0_i32_81] : memref<2x1x!tpu.dma_semaphore, #tpu.memory_space<semaphore_mem>> -> memref<1x1x!tpu.dma_semaphore, #tpu.memory_space<semaphore_mem>>
      %166 = tpu.memref_squeeze %165 : memref<1x1x!tpu.dma_semaphore, #tpu.memory_space<semaphore_mem>> -> memref<!tpu.dma_semaphore, #tpu.memory_space<semaphore_mem>>
      tpu.enqueue_dma source(%162 : memref<32xf32, #tpu.memory_space<any>>) target(%164 : memref<32xf32, #tpu.memory_space<vmem>>) target_semaphore(%166 : memref<!tpu.dma_semaphore, #tpu.memory_space<semaphore_mem>>)
      %c1_i32_84 = arith.constant 1 : i32
      %c0_i32_85 = arith.constant 0 : i32
      %c0_i32_86 = arith.constant 0 : i32
      %167 = tpu.memref_slice %arg4[%160, %c0_i32_86] : memref<128x32xf32, #tpu.memory_space<any>> -> memref<1x32xf32, #tpu.memory_space<any>>
      %168 = tpu.memref_squeeze %167 : memref<1x32xf32, #tpu.memory_space<any>> -> memref<32xf32, #tpu.memory_space<any>>
      %c0_i32_87 = arith.constant 0 : i32
      %169 = tpu.memref_slice %arg7[%154, %c0_i32_87] : memref<128x32xf32, #tpu.memory_space<vmem>> -> memref<1x32xf32, #tpu.memory_space<vmem>>
      %170 = tpu.memref_squeeze %169 : memref<1x32xf32, #tpu.memory_space<vmem>> -> memref<32xf32, #tpu.memory_space<vmem>>
      %171 = tpu.memref_slice %arg8[%c1_i32_84, %c0_i32_85] : memref<2x1x!tpu.dma_semaphore, #tpu.memory_space<semaphore_mem>> -> memref<1x1x!tpu.dma_semaphore, #tpu.memory_space<semaphore_mem>>
      %172 = tpu.memref_squeeze %171 : memref<1x1x!tpu.dma_semaphore, #tpu.memory_space<semaphore_mem>> -> memref<!tpu.dma_semaphore, #tpu.memory_space<semaphore_mem>>
      tpu.enqueue_dma source(%168 : memref<32xf32, #tpu.memory_space<any>>) target(%170 : memref<32xf32, #tpu.memory_space<vmem>>) target_semaphore(%172 : memref<!tpu.dma_semaphore, #tpu.memory_space<semaphore_mem>>)
    }
    %c16_i32_0 = arith.constant 16 : i32
    %c0_i32_1 = arith.constant 0 : i32
    %c0_i32_2 = arith.constant 0 : i32
    %c0_i32_3 = arith.constant 0 : i32
    %c0_i32_4 = arith.constant 0 : i32
    %2 = tpu.memref_slice %arg6[%c0_i32_3, %c0_i32_4] : memref<128x32xf32, #tpu.memory_space<vmem>> -> memref<128x32xf32, #tpu.memory_space<vmem>>
    %c0_i32_5 = arith.constant 0 : i32
    %c0_i32_6 = arith.constant 0 : i32
    %3 = tpu.memref_slice %arg6[%c0_i32_5, %c0_i32_6] : memref<128x32xf32, #tpu.memory_space<vmem>> -> memref<128x32xf32, #tpu.memory_space<vmem>>
    %4 = tpu.memref_slice %arg8[%c0_i32_1, %c0_i32_2] : memref<2x1x!tpu.dma_semaphore, #tpu.memory_space<semaphore_mem>> -> memref<1x1x!tpu.dma_semaphore, #tpu.memory_space<semaphore_mem>>
    %5 = tpu.memref_squeeze %4 : memref<1x1x!tpu.dma_semaphore, #tpu.memory_space<semaphore_mem>> -> memref<!tpu.dma_semaphore, #tpu.memory_space<semaphore_mem>>
    tpu.wait_dma2 semaphore(%5 : memref<!tpu.dma_semaphore, #tpu.memory_space<semaphore_mem>>) src(%2 : memref<128x32xf32, #tpu.memory_space<vmem>>) dst(%3 : memref<128x32xf32, #tpu.memory_space<vmem>>)
    %c1_i32_7 = arith.constant 1 : i32
    %c0_i32_8 = arith.constant 0 : i32
    %c0_i32_9 = arith.constant 0 : i32
    %c0_i32_10 = arith.constant 0 : i32
    %6 = tpu.memref_slice %arg7[%c0_i32_9, %c0_i32_10] : memref<128x32xf32, #tpu.memory_space<vmem>> -> memref<128x32xf32, #tpu.memory_space<vmem>>
    %c0_i32_11 = arith.constant 0 : i32
    %c0_i32_12 = arith.constant 0 : i32
    %7 = tpu.memref_slice %arg7[%c0_i32_11, %c0_i32_12] : memref<128x32xf32, #tpu.memory_space<vmem>> -> memref<128x32xf32, #tpu.memory_space<vmem>>
    %8 = tpu.memref_slice %arg8[%c1_i32_7, %c0_i32_8] : memref<2x1x!tpu.dma_semaphore, #tpu.memory_space<semaphore_mem>> -> memref<1x1x!tpu.dma_semaphore, #tpu.memory_space<semaphore_mem>>
    %9 = tpu.memref_squeeze %8 : memref<1x1x!tpu.dma_semaphore, #tpu.memory_space<semaphore_mem>> -> memref<!tpu.dma_semaphore, #tpu.memory_space<semaphore_mem>>
    tpu.wait_dma2 semaphore(%9 : memref<!tpu.dma_semaphore, #tpu.memory_space<semaphore_mem>>) src(%6 : memref<128x32xf32, #tpu.memory_space<vmem>>) dst(%7 : memref<128x32xf32, #tpu.memory_space<vmem>>)
    %c0 = arith.constant 0 : index
    %c0_13 = arith.constant 0 : index
    %10 = vector.load %arg6[%c0, %c0_13] : memref<128x32xf32, #tpu.memory_space<vmem>>, vector<128x32xf32>
    %c0_14 = arith.constant 0 : index
    %c0_15 = arith.constant 0 : index
    %11 = vector.load %arg7[%c0_14, %c0_15] : memref<128x32xf32, #tpu.memory_space<vmem>>, vector<128x32xf32>
    %12 = arith.mulf %10, %11 : vector<128x32xf32>
    %cst = arith.constant dense<0.000000e+00> : vector<128xf32>
    %13 = vector.multi_reduction <add>, %12, %cst [1] : vector<128x32xf32> to vector<128xf32>
    %c0_16 = arith.constant 0 : index
    %c0_17 = arith.constant 0 : index
    %c0_18 = arith.constant 0 : index
    %14 = vector.load %arg5[%c0_16, %c0_17, %c0_18] : memref<1x1x128xf32, #tpu.memory_space<vmem>>, vector<1x1x128xf32>
    %15 = vector.shape_cast %14 : vector<1x1x128xf32> to vector<128xf32>
    %16 = vector.shape_cast %13 : vector<128xf32> to vector<1x1x128xf32>
    tpu.vector_store %arg5[%c0_16, %c0_17, %c0_18], %16 {strides = array<i32>} : memref<1x1x128xf32, #tpu.memory_space<vmem>>, vector<1x1x128xf32>,
    return
  }
  func.func @transform_2(%arg0: i32, %arg1: memref<128xi32, #tpu.memory_space<smem>>, %arg2: memref<128xi32, #tpu.memory_space<smem>>) -> (i32, i32, i32) {
    %c0_i32 = arith.constant 0 : i32
    %c0_i32_0 = arith.constant 0 : i32
    %c0_i32_1 = arith.constant 0 : i32
    return %arg0, %c0_i32, %c0_i32_0 : i32, i32, i32
  }
}

</mosaic_0001>

<llo_original>
// kernel: tpu_custom_call.1
$region0: #{tpu_custom_call.1}
  #allocation0 [shape = 'u32[]', space=smem, size = 0x4, offset = 0x4, fixed_abs, tag = 'smem constant byte address 0x4 - core index']
  #allocation1 [shape = 'u32[144,128]{1,0:T(1,128)}', space=vmem, size = 0x12000, scoped, tag = 'internal scratch']
  #allocation2 [shape = 'f32[128,32]{1,0:T(8,128)}', space=vmem, size = 0x10000, scoped, tag = 'scratch operand']
  #allocation3 [shape = 'f32[128,32]{1,0:T(8,128)}', space=vmem, size = 0x10000, scoped, tag = 'scratch operand']
  #allocation4 [shape = 's32[2]{0}', space=sflag, size = 0x8, scoped, tag = 'scratch operand']
  #allocation5 [shape = 's32[1]{0}', space=sflag, size = 0x4, scoped, tag = 'scoped memory for tpu_custom_call.1']
  #allocation6 [shape = 'u8[512]{0}', space=smem, size = 0x200, scoped, tag = 'prefetched SMEM operand 0']
  #allocation7 [shape = 'u8[512]{0}', space=smem, size = 0x200, scoped, tag = 'prefetched SMEM operand 1']
  #allocation10 [shape = 's32[]', space=sflag, size = 0x4, offset = 0, fixed_abs, tag = 'sflag constant byte address 0x0 - dummy sync flag']
  #allocation11 [shape = 's32[]', space=sflag, size = 0x4, offset = 0, fixed_abs, tag = 'sflag constant byte address 0x0 - dummy sync flag']
  #allocation12 [shape = 's32[]', space=sflag, size = 0x4, offset = 0, fixed_abs, tag = 'sflag constant byte address 0x0 - dummy sync flag']
  #allocation13 [shape = 's32[]', space=sflag, size = 0x4, offset = 0, fixed_abs, tag = 'sflag constant byte address 0x0 - dummy sync flag']
  #allocation14 [shape = 's32[]', space=sflag, size = 0x4, offset = 0, fixed_abs, tag = 'sflag constant byte address 0x0 - dummy sync flag']
  #allocation15 [shape = 's32[]', space=sflag, size = 0x4, offset = 0, fixed_abs, tag = 'sflag constant byte address 0x0 - dummy sync flag']
  #allocation16 [shape = 's32[]', space=sflag, size = 0x4, offset = 0, fixed_abs, tag = 'sflag constant byte address 0x0 - dummy sync flag']
  #allocation17 [shape = 's32[]', space=sflag, size = 0x4, offset = 0, fixed_abs, tag = 'sflag constant byte address 0x0 - dummy sync flag']
  #allocation18 [shape = 's32[]', space=sflag, size = 0x4, offset = 0, fixed_abs, tag = 'sflag constant byte address 0x0 - dummy sync flag']
  #allocation19 [shape = 's32[]', space=sflag, size = 0x4, offset = 0, fixed_abs, tag = 'sflag constant byte address 0x0 - dummy sync flag']
  #allocation20 [shape = 's32[]', space=sflag, size = 0x4, offset = 0, fixed_abs, tag = 'sflag constant byte address 0x0 - dummy sync flag']
  #allocation21 [shape = 's32[]', space=sflag, size = 0x4, offset = 0, fixed_abs, tag = 'sflag constant byte address 0x0 - dummy sync flag']
  #allocation22 [shape = 's32[]', space=sflag, size = 0x4, offset = 0, fixed_abs, tag = 'sflag constant byte address 0x0 - dummy sync flag']
  #allocation23 [shape = 's32[]', space=sflag, size = 0x4, offset = 0, fixed_abs, tag = 'sflag constant byte address 0x0 - dummy sync flag']
  #allocation24 [shape = 's32[]', space=sflag, size = 0x4, offset = 0, fixed_abs, tag = 'sflag constant byte address 0x0 - dummy sync flag']
  #allocation25 [shape = 's32[]', space=sflag, size = 0x4, offset = 0, fixed_abs, tag = 'sflag constant byte address 0x0 - dummy sync flag']
  %s0 = inlined_call_operand.vmem [shape: s32[128], index: 0, kind: input, shape index: {}]
  %s1 = inlined_call_operand.vmem [shape: s32[128], index: 1, kind: input, shape index: {}]
  %s2 = inlined_call_operand.vmem [shape: f32[64,32], index: 2, kind: input, shape index: {}]
  %s3 = inlined_call_operand.vmem [shape: f32[128,32], index: 3, kind: input, shape index: {}]
  %s4 = inlined_call_operand.hbm [shape: f32[1,1,128], index: 4, kind: output, shape index: {}]
  %s5 = sld [smem:[#allocation0]]
  $region497: #{tpu_custom_call.1} parent=0
    _
  %s7 = ssub.s32 1, %s5
  %s8 = scalar_select 0, %s7, %s5
  %s9 = sshll.u32 %s0, 4
  %s10 = int_to_ptr.vmem [resolvable:$true] %s9
  %12 = dma.vmem_to_smem %s10, 16, [#allocation6], [#allocation5]
  %s13 = sshll.u32 %s1, 4
  %s14 = int_to_ptr.vmem [resolvable:$true] %s13
  %16 = dma.vmem_to_smem %s14, 16, [#allocation7], [#allocation5]
  %17 = dma.done [#allocation5], 32
  %18 = sfence
  $region1: #{tpu_custom_call.1} parent=0
    #allocation8 [shape = 'u8[512]{0}', space=vmem, size = 0x400, scoped, tag = 'output window, operand 0, single buffered']
    #allocation9 [shape = 's32[1]{0}', space=sflag, size = 0x4, scoped, tag = 'scoped memory for tpu_custom_call.1']
    %19 = vsyncpa [#allocation9], 0
    %s20 = smul.u32 0, 128
    loop: start=0, step=1, limit=16
    $region2: #{tpu_custom_call.1} parent=1 // loop_pre_header
      _
    $region3: #{tpu_custom_call.1} parent=1 // loop_header
      %s22 = sphi 0, %s26
      %p23 = scmp.ge.s32.totalorder %s22, 16
    $region4: #{tpu_custom_call.1} parent=1 // loop_header_branch
      %25 = sbr.rel (%p23) target = $region8
    $region5: #{tpu_custom_call.1} parent=1 // loop_body
      %s27 = smul.u32 %s22, 8
      %s28 = sadd.s32 %s20, %s27
      %s29 = sld [smem:[#allocation6 + %s28]]
      %s30 = sld [smem:[#allocation7 + %s28]]
      %s31 = scalar_lea.vmem %s2, %s29
      %s32 = scalar_lea.vmem [#allocation2], %s27
      %p34 = scmp.lt.u32.totalorder 1, 8
      %p35 = pneg %p34
      // Predicated region
      $region9: #{tpu_custom_call.1} parent=5 // pred_check
        _
      $region10: #{tpu_custom_call.1} parent=5 // pred_check_branch
        %37 = sbr.rel (%p34) target = $region12
      $region11: #{tpu_custom_call.1} parent=5 // pred_region
        %s52 = sand.u32 1, 7
        %p53 = scmp.eq.s32.totalorder %s52, 0
        %p54 = pneg %p53
        // Predicated region
        $region24: #{tpu_custom_call.1} parent=11 // pred_check
          _
        $region25: #{tpu_custom_call.1} parent=11 // pred_check_branch
          %56 = sbr.rel (%p53) target = $region27
        $region26: #{tpu_custom_call.1} parent=11 // pred_region
          %s57 = sand.u32 1, 7
          %s58 = ssub.s32 1, %s57
          %s59 = scalar_lea.vmem %s31, %s58
          %s60 = ssub.s32 1, %s57
          %s61 = scalar_lea.vmem %s32, %s60 [#allocation2]
          %s62 = sshllo.u32 0, %s57
          loop: start=0, step=1, limit=1
          $region28: #{tpu_custom_call.1} parent=26 // loop_pre_header
            _
          $region29: #{tpu_custom_call.1} parent=26 // loop_header
            %s64 = sphi 0, %s68
            %p65 = scmp.ge.s32.totalorder %s64, 1
            %s69 = sphi %s59, %s59
            %s70 = sphi %s61, %s61
          $region30: #{tpu_custom_call.1} parent=26 // loop_header_branch
            %67 = sbr.rel (%p65) target = $region34
          $region31: #{tpu_custom_call.1} parent=26 // loop_body
            %v71 = vld [vmem:[%s69] sm:%s62]
            %72 = vst [vmem:[%s70] sm:%s62] %v71
          $region32: #{tpu_custom_call.1} parent=26 // loop_footer
            %s68 = sadd.s32 1, %s64
          $region33: #{tpu_custom_call.1} parent=26 // loop_footer_branch
            %63 = sbr.rel target = $region29
          $region34: #{tpu_custom_call.1} parent=26 // loop_exit
            _
        $region27: #{tpu_custom_call.1} parent=11 // pred_fallthru
          _
      $region12: #{tpu_custom_call.1} parent=5 // pred_fallthru
        _
      // Predicated region
      $region13: #{tpu_custom_call.1} parent=5 // pred_check
        %p38 = pneg %p34
      $region14: #{tpu_custom_call.1} parent=5 // pred_check_branch
        %40 = sbr.rel (%p38) target = $region16
      $region15: #{tpu_custom_call.1} parent=5 // pred_region
        %s41 = sshllo.u32 0, 1
        loop: start=0, step=1, limit=1
        $region17: #{tpu_custom_call.1} parent=15 // loop_pre_header
          _
        $region18: #{tpu_custom_call.1} parent=15 // loop_header
          %s43 = sphi 0, %s47
          %p44 = scmp.ge.s32.totalorder %s43, 1
          %s48 = sphi %s31, %s31
          %s49 = sphi %s32, %s32
        $region19: #{tpu_custom_call.1} parent=15 // loop_header_branch
          %46 = sbr.rel (%p44) target = $region23
        $region20: #{tpu_custom_call.1} parent=15 // loop_body
          %v50 = vld [vmem:[%s48] sm:%s41]
          %51 = vst [vmem:[%s49] sm:%s41] %v50
        $region21: #{tpu_custom_call.1} parent=15 // loop_footer
          %s47 = sadd.s32 1, %s43
        $region22: #{tpu_custom_call.1} parent=15 // loop_footer_branch
          %42 = sbr.rel target = $region18
        $region23: #{tpu_custom_call.1} parent=15 // loop_exit
          _
      $region16: #{tpu_custom_call.1} parent=5 // pred_fallthru
        _
      // Predicated region
      $region35: #{tpu_custom_call.1} parent=5 // pred_check
        _
      $region36: #{tpu_custom_call.1} parent=5 // pred_check_branch
        %75 = sbr.rel (0) target = $region38
      $region37: #{tpu_custom_call.1} parent=5 // pred_region
        %76 = vsyncadd [#allocation4], 16
      $region38: #{tpu_custom_call.1} parent=5 // pred_fallthru
        _
      %s77 = scalar_lea.vmem %s3, %s30
      %s78 = scalar_lea.vmem [#allocation3], %s27
      %s79 = scalar_lea.sflag [#allocation4], 1
      %p81 = scmp.lt.u32.totalorder 1, 8
      %p82 = pneg %p81
      // Predicated region
      $region39: #{tpu_custom_call.1} parent=5 // pred_check
        _
      $region40: #{tpu_custom_call.1} parent=5 // pred_check_branch
        %84 = sbr.rel (%p81) target = $region42
      $region41: #{tpu_custom_call.1} parent=5 // pred_region
        %s99 = sand.u32 1, 7
        %p100 = scmp.eq.s32.totalorder %s99, 0
        %p101 = pneg %p100
        // Predicated region
        $region54: #{tpu_custom_call.1} parent=41 // pred_check
          _
        $region55: #{tpu_custom_call.1} parent=41 // pred_check_branch
          %103 = sbr.rel (%p100) target = $region57
        $region56: #{tpu_custom_call.1} parent=41 // pred_region
          %s104 = sand.u32 1, 7
          %s105 = ssub.s32 1, %s104
          %s106 = scalar_lea.vmem %s77, %s105
          %s107 = ssub.s32 1, %s104
          %s108 = scalar_lea.vmem %s78, %s107 [#allocation3]
          %s109 = sshllo.u32 0, %s104
          loop: start=0, step=1, limit=1
          $region58: #{tpu_custom_call.1} parent=56 // loop_pre_header
            _
          $region59: #{tpu_custom_call.1} parent=56 // loop_header
            %s111 = sphi 0, %s115
            %p112 = scmp.ge.s32.totalorder %s111, 1
            %s116 = sphi %s106, %s106
            %s117 = sphi %s108, %s108
          $region60: #{tpu_custom_call.1} parent=56 // loop_header_branch
            %114 = sbr.rel (%p112) target = $region64
          $region61: #{tpu_custom_call.1} parent=56 // loop_body
            %v118 = vld [vmem:[%s116] sm:%s109]
            %119 = vst [vmem:[%s117] sm:%s109] %v118
          $region62: #{tpu_custom_call.1} parent=56 // loop_footer
            %s115 = sadd.s32 1, %s111
          $region63: #{tpu_custom_call.1} parent=56 // loop_footer_branch
            %110 = sbr.rel target = $region59
          $region64: #{tpu_custom_call.1} parent=56 // loop_exit
            _
        $region57: #{tpu_custom_call.1} parent=41 // pred_fallthru
          _
      $region42: #{tpu_custom_call.1} parent=5 // pred_fallthru
        _
      // Predicated region
      $region43: #{tpu_custom_call.1} parent=5 // pred_check
        %p85 = pneg %p81
      $region44: #{tpu_custom_call.1} parent=5 // pred_check_branch
        %87 = sbr.rel (%p85) target = $region46
      $region45: #{tpu_custom_call.1} parent=5 // pred_region
        %s88 = sshllo.u32 0, 1
        loop: start=0, step=1, limit=1
        $region47: #{tpu_custom_call.1} parent=45 // loop_pre_header
          _
        $region48: #{tpu_custom_call.1} parent=45 // loop_header
          %s90 = sphi 0, %s94
          %p91 = scmp.ge.s32.totalorder %s90, 1
          %s95 = sphi %s77, %s77
          %s96 = sphi %s78, %s78
        $region49: #{tpu_custom_call.1} parent=45 // loop_header_branch
          %93 = sbr.rel (%p91) target = $region53
        $region50: #{tpu_custom_call.1} parent=45 // loop_body
          %v97 = vld [vmem:[%s95] sm:%s88]
          %98 = vst [vmem:[%s96] sm:%s88] %v97
        $region51: #{tpu_custom_call.1} parent=45 // loop_footer
          %s94 = sadd.s32 1, %s90
        $region52: #{tpu_custom_call.1} parent=45 // loop_footer_branch
          %89 = sbr.rel target = $region48
        $region53: #{tpu_custom_call.1} parent=45 // loop_exit
          _
      $region46: #{tpu_custom_call.1} parent=5 // pred_fallthru
        _
      // Predicated region
      $region65: #{tpu_custom_call.1} parent=5 // pred_check
        _
      $region66: #{tpu_custom_call.1} parent=5 // pred_check_branch
        %122 = sbr.rel (0) target = $region68
      $region67: #{tpu_custom_call.1} parent=5 // pred_region
        %123 = vsyncadd %s79, 16
      $region68: #{tpu_custom_call.1} parent=5 // pred_fallthru
        _
      %s124 = sadd.s32 %s27, 1
      %s125 = sadd.s32 %s20, %s124
      %s126 = sld [smem:[#allocation6 + %s125]]
      %s127 = sld [smem:[#allocation7 + %s125]]
      %s128 = scalar_lea.vmem %s2, %s126
      %s129 = scalar_lea.vmem [#allocation2], %s124
      %p131 = scmp.lt.u32.totalorder 1, 8
      %p132 = pneg %p131
      // Predicated region
      $region69: #{tpu_custom_call.1} parent=5 // pred_check
        _
      $region70: #{tpu_custom_call.1} parent=5 // pred_check_branch
        %134 = sbr.rel (%p131) target = $region72
      $region71: #{tpu_custom_call.1} parent=5 // pred_region
        %s149 = sand.u32 1, 7
        %p150 = scmp.eq.s32.totalorder %s149, 0
        %p151 = pneg %p150
        // Predicated region
        $region84: #{tpu_custom_call.1} parent=71 // pred_check
          _
        $region85: #{tpu_custom_call.1} parent=71 // pred_check_branch
          %153 = sbr.rel (%p150) target = $region87
        $region86: #{tpu_custom_call.1} parent=71 // pred_region
          %s154 = sand.u32 1, 7
          %s155 = ssub.s32 1, %s154
          %s156 = scalar_lea.vmem %s128, %s155
          %s157 = ssub.s32 1, %s154
          %s158 = scalar_lea.vmem %s129, %s157 [#allocation2]
          %s159 = sshllo.u32 0, %s154
          loop: start=0, step=1, limit=1
          $region88: #{tpu_custom_call.1} parent=86 // loop_pre_header
            _
          $region89: #{tpu_custom_call.1} parent=86 // loop_header
            %s161 = sphi 0, %s165
            %p162 = scmp.ge.s32.totalorder %s161, 1
            %s166 = sphi %s156, %s156
            %s167 = sphi %s158, %s158
          $region90: #{tpu_custom_call.1} parent=86 // loop_header_branch
            %164 = sbr.rel (%p162) target = $region94
          $region91: #{tpu_custom_call.1} parent=86 // loop_body
            %v168 = vld [vmem:[%s166] sm:%s159]
            %169 = vst [vmem:[%s167] sm:%s159] %v168
          $region92: #{tpu_custom_call.1} parent=86 // loop_footer
            %s165 = sadd.s32 1, %s161
          $region93: #{tpu_custom_call.1} parent=86 // loop_footer_branch
            %160 = sbr.rel target = $region89
          $region94: #{tpu_custom_call.1} parent=86 // loop_exit
            _
        $region87: #{tpu_custom_call.1} parent=71 // pred_fallthru
          _
      $region72: #{tpu_custom_call.1} parent=5 // pred_fallthru
        _
      // Predicated region
      $region73: #{tpu_custom_call.1} parent=5 // pred_check
        %p135 = pneg %p131
      $region74: #{tpu_custom_call.1} parent=5 // pred_check_branch
        %137 = sbr.rel (%p135) target = $region76
      $region75: #{tpu_custom_call.1} parent=5 // pred_region
        %s138 = sshllo.u32 0, 1
        loop: start=0, step=1, limit=1
        $region77: #{tpu_custom_call.1} parent=75 // loop_pre_header
          _
        $region78: #{tpu_custom_call.1} parent=75 // loop_header
          %s140 = sphi 0, %s144
          %p141 = scmp.ge.s32.totalorder %s140, 1
          %s145 = sphi %s128, %s128
          %s146 = sphi %s129, %s129
        $region79: #{tpu_custom_call.1} parent=75 // loop_header_branch
          %143 = sbr.rel (%p141) target = $region83
        $region80: #{tpu_custom_call.1} parent=75 // loop_body
          %v147 = vld [vmem:[%s145] sm:%s138]
          %148 = vst [vmem:[%s146] sm:%s138] %v147
        $region81: #{tpu_custom_call.1} parent=75 // loop_footer
          %s144 = sadd.s32 1, %s140
        $region82: #{tpu_custom_call.1} parent=75 // loop_footer_branch
          %139 = sbr.rel target = $region78
        $region83: #{tpu_custom_call.1} parent=75 // loop_exit
          _
      $region76: #{tpu_custom_call.1} parent=5 // pred_fallthru
        _
      // Predicated region
      $region95: #{tpu_custom_call.1} parent=5 // pred_check
        _
      $region96: #{tpu_custom_call.1} parent=5 // pred_check_branch
        %172 = sbr.rel (0) target = $region98
      $region97: #{tpu_custom_call.1} parent=5 // pred_region
        %173 = vsyncadd [#allocation4], 16
      $region98: #{tpu_custom_call.1} parent=5 // pred_fallthru
        _
      %s174 = scalar_lea.vmem %s3, %s127
      %s175 = scalar_lea.vmem [#allocation3], %s124
      %p177 = scmp.lt.u32.totalorder 1, 8
      %p178 = pneg %p177
      // Predicated region
      $region99: #{tpu_custom_call.1} parent=5 // pred_check
        _
      $region100: #{tpu_custom_call.1} parent=5 // pred_check_branch
        %180 = sbr.rel (%p177) target = $region102
      $region101: #{tpu_custom_call.1} parent=5 // pred_region
        %s195 = sand.u32 1, 7
        %p196 = scmp.eq.s32.totalorder %s195, 0
        %p197 = pneg %p196
        // Predicated region
        $region114: #{tpu_custom_call.1} parent=101 // pred_check
          _
        $region115: #{tpu_custom_call.1} parent=101 // pred_check_branch
          %199 = sbr.rel (%p196) target = $region117
        $region116: #{tpu_custom_call.1} parent=101 // pred_region
          %s200 = sand.u32 1, 7
          %s201 = ssub.s32 1, %s200
          %s202 = scalar_lea.vmem %s174, %s201
          %s203 = ssub.s32 1, %s200
          %s204 = scalar_lea.vmem %s175, %s203 [#allocation3]
          %s205 = sshllo.u32 0, %s200
          loop: start=0, step=1, limit=1
          $region118: #{tpu_custom_call.1} parent=116 // loop_pre_header
            _
          $region119: #{tpu_custom_call.1} parent=116 // loop_header
            %s207 = sphi 0, %s211
            %p208 = scmp.ge.s32.totalorder %s207, 1
            %s212 = sphi %s202, %s202
            %s213 = sphi %s204, %s204
          $region120: #{tpu_custom_call.1} parent=116 // loop_header_branch
            %210 = sbr.rel (%p208) target = $region124
          $region121: #{tpu_custom_call.1} parent=116 // loop_body
            %v214 = vld [vmem:[%s212] sm:%s205]
            %215 = vst [vmem:[%s213] sm:%s205] %v214
          $region122: #{tpu_custom_call.1} parent=116 // loop_footer
            %s211 = sadd.s32 1, %s207
          $region123: #{tpu_custom_call.1} parent=116 // loop_footer_branch
            %206 = sbr.rel target = $region119
          $region124: #{tpu_custom_call.1} parent=116 // loop_exit
            _
        $region117: #{tpu_custom_call.1} parent=101 // pred_fallthru
          _
      $region102: #{tpu_custom_call.1} parent=5 // pred_fallthru
        _
      // Predicated region
      $region103: #{tpu_custom_call.1} parent=5 // pred_check
        %p181 = pneg %p177
      $region104: #{tpu_custom_call.1} parent=5 // pred_check_branch
        %183 = sbr.rel (%p181) target = $region106
      $region105: #{tpu_custom_call.1} parent=5 // pred_region
        %s184 = sshllo.u32 0, 1
        loop: start=0, step=1, limit=1
        $region107: #{tpu_custom_call.1} parent=105 // loop_pre_header
          _
        $region108: #{tpu_custom_call.1} parent=105 // loop_header
          %s186 = sphi 0, %s190
          %p187 = scmp.ge.s32.totalorder %s186, 1
          %s191 = sphi %s174, %s174
          %s192 = sphi %s175, %s175
        $region109: #{tpu_custom_call.1} parent=105 // loop_header_branch
          %189 = sbr.rel (%p187) target = $region113
        $region110: #{tpu_custom_call.1} parent=105 // loop_body
          %v193 = vld [vmem:[%s191] sm:%s184]
          %194 = vst [vmem:[%s192] sm:%s184] %v193
        $region111: #{tpu_custom_call.1} parent=105 // loop_footer
          %s190 = sadd.s32 1, %s186
        $region112: #{tpu_custom_call.1} parent=105 // loop_footer_branch
          %185 = sbr.rel target = $region108
        $region113: #{tpu_custom_call.1} parent=105 // loop_exit
          _
      $region106: #{tpu_custom_call.1} parent=5 // pred_fallthru
        _
      // Predicated region
      $region125: #{tpu_custom_call.1} parent=5 // pred_check
        _
      $region126: #{tpu_custom_call.1} parent=5 // pred_check_branch
        %218 = sbr.rel (0) target = $region128
      $region127: #{tpu_custom_call.1} parent=5 // pred_region
        %219 = vsyncadd %s79, 16
      $region128: #{tpu_custom_call.1} parent=5 // pred_fallthru
        _
      %s220 = sadd.s32 %s27, 2
      %s221 = sadd.s32 %s20, %s220
      %s222 = sld [smem:[#allocation6 + %s221]]
      %s223 = sld [smem:[#allocation7 + %s221]]
      %s224 = scalar_lea.vmem %s2, %s222
      %s225 = scalar_lea.vmem [#allocation2], %s220
      %p227 = scmp.lt.u32.totalorder 1, 8
      %p228 = pneg %p227
      // Predicated region
      $region129: #{tpu_custom_call.1} parent=5 // pred_check
        _
      $region130: #{tpu_custom_call.1} parent=5 // pred_check_branch
        %230 = sbr.rel (%p227) target = $region132
      $region131: #{tpu_custom_call.1} parent=5 // pred_region
        %s245 = sand.u32 1, 7
        %p246 = scmp.eq.s32.totalorder %s245, 0
        %p247 = pneg %p246
        // Predicated region
        $region144: #{tpu_custom_call.1} parent=131 // pred_check
          _
        $region145: #{tpu_custom_call.1} parent=131 // pred_check_branch
          %249 = sbr.rel (%p246) target = $region147
        $region146: #{tpu_custom_call.1} parent=131 // pred_region
          %s250 = sand.u32 1, 7
          %s251 = ssub.s32 1, %s250
          %s252 = scalar_lea.vmem %s224, %s251
          %s253 = ssub.s32 1, %s250
          %s254 = scalar_lea.vmem %s225, %s253 [#allocation2]
          %s255 = sshllo.u32 0, %s250
          loop: start=0, step=1, limit=1
          $region148: #{tpu_custom_call.1} parent=146 // loop_pre_header
            _
          $region149: #{tpu_custom_call.1} parent=146 // loop_header
            %s257 = sphi 0, %s261
            %p258 = scmp.ge.s32.totalorder %s257, 1
            %s262 = sphi %s252, %s252
            %s263 = sphi %s254, %s254
          $region150: #{tpu_custom_call.1} parent=146 // loop_header_branch
            %260 = sbr.rel (%p258) target = $region154
          $region151: #{tpu_custom_call.1} parent=146 // loop_body
            %v264 = vld [vmem:[%s262] sm:%s255]
            %265 = vst [vmem:[%s263] sm:%s255] %v264
          $region152: #{tpu_custom_call.1} parent=146 // loop_footer
            %s261 = sadd.s32 1, %s257
          $region153: #{tpu_custom_call.1} parent=146 // loop_footer_branch
            %256 = sbr.rel target = $region149
          $region154: #{tpu_custom_call.1} parent=146 // loop_exit
            _
        $region147: #{tpu_custom_call.1} parent=131 // pred_fallthru
          _
      $region132: #{tpu_custom_call.1} parent=5 // pred_fallthru
        _
      // Predicated region
      $region133: #{tpu_custom_call.1} parent=5 // pred_check
        %p231 = pneg %p227
      $region134: #{tpu_custom_call.1} parent=5 // pred_check_branch
        %233 = sbr.rel (%p231) target = $region136
      $region135: #{tpu_custom_call.1} parent=5 // pred_region
        %s234 = sshllo.u32 0, 1
        loop: start=0, step=1, limit=1
        $region137: #{tpu_custom_call.1} parent=135 // loop_pre_header
          _
        $region138: #{tpu_custom_call.1} parent=135 // loop_header
          %s236 = sphi 0, %s240
          %p237 = scmp.ge.s32.totalorder %s236, 1
          %s241 = sphi %s224, %s224
          %s242 = sphi %s225, %s225
        $region139: #{tpu_custom_call.1} parent=135 // loop_header_branch
          %239 = sbr.rel (%p237) target = $region143
        $region140: #{tpu_custom_call.1} parent=135 // loop_body
          %v243 = vld [vmem:[%s241] sm:%s234]
          %244 = vst [vmem:[%s242] sm:%s234] %v243
        $region141: #{tpu_custom_call.1} parent=135 // loop_footer
          %s240 = sadd.s32 1, %s236
        $region142: #{tpu_custom_call.1} parent=135 // loop_footer_branch
          %235 = sbr.rel target = $region138
        $region143: #{tpu_custom_call.1} parent=135 // loop_exit
          _
      $region136: #{tpu_custom_call.1} parent=5 // pred_fallthru
        _
      // Predicated region
      $region155: #{tpu_custom_call.1} parent=5 // pred_check
        _
      $region156: #{tpu_custom_call.1} parent=5 // pred_check_branch
        %268 = sbr.rel (0) target = $region158
      $region157: #{tpu_custom_call.1} parent=5 // pred_region
        %269 = vsyncadd [#allocation4], 16
      $region158: #{tpu_custom_call.1} parent=5 // pred_fallthru
        _
      %s270 = scalar_lea.vmem %s3, %s223
      %s271 = scalar_lea.vmem [#allocation3], %s220
      %p273 = scmp.lt.u32.totalorder 1, 8
      %p274 = pneg %p273
      // Predicated region
      $region159: #{tpu_custom_call.1} parent=5 // pred_check
        _
      $region160: #{tpu_custom_call.1} parent=5 // pred_check_branch
        %276 = sbr.rel (%p273) target = $region162
      $region161: #{tpu_custom_call.1} parent=5 // pred_region
        %s291 = sand.u32 1, 7
        %p292 = scmp.eq.s32.totalorder %s291, 0
        %p293 = pneg %p292
        // Predicated region
        $region174: #{tpu_custom_call.1} parent=161 // pred_check
          _
        $region175: #{tpu_custom_call.1} parent=161 // pred_check_branch
          %295 = sbr.rel (%p292) target = $region177
        $region176: #{tpu_custom_call.1} parent=161 // pred_region
          %s296 = sand.u32 1, 7
          %s297 = ssub.s32 1, %s296
          %s298 = scalar_lea.vmem %s270, %s297
          %s299 = ssub.s32 1, %s296
          %s300 = scalar_lea.vmem %s271, %s299 [#allocation3]
          %s301 = sshllo.u32 0, %s296
          loop: start=0, step=1, limit=1
          $region178: #{tpu_custom_call.1} parent=176 // loop_pre_header
            _
          $region179: #{tpu_custom_call.1} parent=176 // loop_header
            %s303 = sphi 0, %s307
            %p304 = scmp.ge.s32.totalorder %s303, 1
            %s308 = sphi %s298, %s298
            %s309 = sphi %s300, %s300
          $region180: #{tpu_custom_call.1} parent=176 // loop_header_branch
            %306 = sbr.rel (%p304) target = $region184
          $region181: #{tpu_custom_call.1} parent=176 // loop_body
            %v310 = vld [vmem:[%s308] sm:%s301]
            %311 = vst [vmem:[%s309] sm:%s301] %v310
          $region182: #{tpu_custom_call.1} parent=176 // loop_footer
            %s307 = sadd.s32 1, %s303
          $region183: #{tpu_custom_call.1} parent=176 // loop_footer_branch
            %302 = sbr.rel target = $region179
          $region184: #{tpu_custom_call.1} parent=176 // loop_exit
            _
        $region177: #{tpu_custom_call.1} parent=161 // pred_fallthru
          _
      $region162: #{tpu_custom_call.1} parent=5 // pred_fallthru
        _
      // Predicated region
      $region163: #{tpu_custom_call.1} parent=5 // pred_check
        %p277 = pneg %p273
      $region164: #{tpu_custom_call.1} parent=5 // pred_check_branch
        %279 = sbr.rel (%p277) target = $region166
      $region165: #{tpu_custom_call.1} parent=5 // pred_region
        %s280 = sshllo.u32 0, 1
        loop: start=0, step=1, limit=1
        $region167: #{tpu_custom_call.1} parent=165 // loop_pre_header
          _
        $region168: #{tpu_custom_call.1} parent=165 // loop_header
          %s282 = sphi 0, %s286
          %p283 = scmp.ge.s32.totalorder %s282, 1
          %s287 = sphi %s270, %s270
          %s288 = sphi %s271, %s271
        $region169: #{tpu_custom_call.1} parent=165 // loop_header_branch
          %285 = sbr.rel (%p283) target = $region173
        $region170: #{tpu_custom_call.1} parent=165 // loop_body
          %v289 = vld [vmem:[%s287] sm:%s280]
          %290 = vst [vmem:[%s288] sm:%s280] %v289
        $region171: #{tpu_custom_call.1} parent=165 // loop_footer
          %s286 = sadd.s32 1, %s282
        $region172: #{tpu_custom_call.1} parent=165 // loop_footer_branch
          %281 = sbr.rel target = $region168
        $region173: #{tpu_custom_call.1} parent=165 // loop_exit
          _
      $region166: #{tpu_custom_call.1} parent=5 // pred_fallthru
        _
      // Predicated region
      $region185: #{tpu_custom_call.1} parent=5 // pred_check
        _
      $region186: #{tpu_custom_call.1} parent=5 // pred_check_branch
        %314 = sbr.rel (0) target = $region188
      $region187: #{tpu_custom_call.1} parent=5 // pred_region
        %315 = vsyncadd %s79, 16
      $region188: #{tpu_custom_call.1} parent=5 // pred_fallthru
        _
      %s316 = sadd.s32 %s27, 3
      %s317 = sadd.s32 %s20, %s316
      %s318 = sld [smem:[#allocation6 + %s317]]
      %s319 = sld [smem:[#allocation7 + %s317]]
      %s320 = scalar_lea.vmem %s2, %s318
      %s321 = scalar_lea.vmem [#allocation2], %s316
      %p323 = scmp.lt.u32.totalorder 1, 8
      %p324 = pneg %p323
      // Predicated region
      $region189: #{tpu_custom_call.1} parent=5 // pred_check
        _
      $region190: #{tpu_custom_call.1} parent=5 // pred_check_branch
        %326 = sbr.rel (%p323) target = $region192
      $region191: #{tpu_custom_call.1} parent=5 // pred_region
        %s341 = sand.u32 1, 7
        %p342 = scmp.eq.s32.totalorder %s341, 0
        %p343 = pneg %p342
        // Predicated region
        $region204: #{tpu_custom_call.1} parent=191 // pred_check
          _
        $region205: #{tpu_custom_call.1} parent=191 // pred_check_branch
          %345 = sbr.rel (%p342) target = $region207
        $region206: #{tpu_custom_call.1} parent=191 // pred_region
          %s346 = sand.u32 1, 7
          %s347 = ssub.s32 1, %s346
          %s348 = scalar_lea.vmem %s320, %s347
          %s349 = ssub.s32 1, %s346
          %s350 = scalar_lea.vmem %s321, %s349 [#allocation2]
          %s351 = sshllo.u32 0, %s346
          loop: start=0, step=1, limit=1
          $region208: #{tpu_custom_call.1} parent=206 // loop_pre_header
            _
          $region209: #{tpu_custom_call.1} parent=206 // loop_header
            %s353 = sphi 0, %s357
            %p354 = scmp.ge.s32.totalorder %s353, 1
            %s358 = sphi %s348, %s348
            %s359 = sphi %s350, %s350
          $region210: #{tpu_custom_call.1} parent=206 // loop_header_branch
            %356 = sbr.rel (%p354) target = $region214
          $region211: #{tpu_custom_call.1} parent=206 // loop_body
            %v360 = vld [vmem:[%s358] sm:%s351]
            %361 = vst [vmem:[%s359] sm:%s351] %v360
          $region212: #{tpu_custom_call.1} parent=206 // loop_footer
            %s357 = sadd.s32 1, %s353
          $region213: #{tpu_custom_call.1} parent=206 // loop_footer_branch
            %352 = sbr.rel target = $region209
          $region214: #{tpu_custom_call.1} parent=206 // loop_exit
            _
        $region207: #{tpu_custom_call.1} parent=191 // pred_fallthru
          _
      $region192: #{tpu_custom_call.1} parent=5 // pred_fallthru
        _
      // Predicated region
      $region193: #{tpu_custom_call.1} parent=5 // pred_check
        %p327 = pneg %p323
      $region194: #{tpu_custom_call.1} parent=5 // pred_check_branch
        %329 = sbr.rel (%p327) target = $region196
      $region195: #{tpu_custom_call.1} parent=5 // pred_region
        %s330 = sshllo.u32 0, 1
        loop: start=0, step=1, limit=1
        $region197: #{tpu_custom_call.1} parent=195 // loop_pre_header
          _
        $region198: #{tpu_custom_call.1} parent=195 // loop_header
          %s332 = sphi 0, %s336
          %p333 = scmp.ge.s32.totalorder %s332, 1
          %s337 = sphi %s320, %s320
          %s338 = sphi %s321, %s321
        $region199: #{tpu_custom_call.1} parent=195 // loop_header_branch
          %335 = sbr.rel (%p333) target = $region203
        $region200: #{tpu_custom_call.1} parent=195 // loop_body
          %v339 = vld [vmem:[%s337] sm:%s330]
          %340 = vst [vmem:[%s338] sm:%s330] %v339
        $region201: #{tpu_custom_call.1} parent=195 // loop_footer
          %s336 = sadd.s32 1, %s332
        $region202: #{tpu_custom_call.1} parent=195 // loop_footer_branch
          %331 = sbr.rel target = $region198
        $region203: #{tpu_custom_call.1} parent=195 // loop_exit
          _
      $region196: #{tpu_custom_call.1} parent=5 // pred_fallthru
        _
      // Predicated region
      $region215: #{tpu_custom_call.1} parent=5 // pred_check
        _
      $region216: #{tpu_custom_call.1} parent=5 // pred_check_branch
        %364 = sbr.rel (0) target = $region218
      $region217: #{tpu_custom_call.1} parent=5 // pred_region
        %365 = vsyncadd [#allocation4], 16
      $region218: #{tpu_custom_call.1} parent=5 // pred_fallthru
        _
      %s366 = scalar_lea.vmem %s3, %s319
      %s367 = scalar_lea.vmem [#allocation3], %s316
      %p369 = scmp.lt.u32.totalorder 1, 8
      %p370 = pneg %p369
      // Predicated region
      $region219: #{tpu_custom_call.1} parent=5 // pred_check
        _
      $region220: #{tpu_custom_call.1} parent=5 // pred_check_branch
        %372 = sbr.rel (%p369) target = $region222
      $region221: #{tpu_custom_call.1} parent=5 // pred_region
        %s387 = sand.u32 1, 7
        %p388 = scmp.eq.s32.totalorder %s387, 0
        %p389 = pneg %p388
        // Predicated region
        $region234: #{tpu_custom_call.1} parent=221 // pred_check
          _
        $region235: #{tpu_custom_call.1} parent=221 // pred_check_branch
          %391 = sbr.rel (%p388) target = $region237
        $region236: #{tpu_custom_call.1} parent=221 // pred_region
          %s392 = sand.u32 1, 7
          %s393 = ssub.s32 1, %s392
          %s394 = scalar_lea.vmem %s366, %s393
          %s395 = ssub.s32 1, %s392
          %s396 = scalar_lea.vmem %s367, %s395 [#allocation3]
          %s397 = sshllo.u32 0, %s392
          loop: start=0, step=1, limit=1
          $region238: #{tpu_custom_call.1} parent=236 // loop_pre_header
            _
          $region239: #{tpu_custom_call.1} parent=236 // loop_header
            %s399 = sphi 0, %s403
            %p400 = scmp.ge.s32.totalorder %s399, 1
            %s404 = sphi %s394, %s394
            %s405 = sphi %s396, %s396
          $region240: #{tpu_custom_call.1} parent=236 // loop_header_branch
            %402 = sbr.rel (%p400) target = $region244
          $region241: #{tpu_custom_call.1} parent=236 // loop_body
            %v406 = vld [vmem:[%s404] sm:%s397]
            %407 = vst [vmem:[%s405] sm:%s397] %v406
          $region242: #{tpu_custom_call.1} parent=236 // loop_footer
            %s403 = sadd.s32 1, %s399
          $region243: #{tpu_custom_call.1} parent=236 // loop_footer_branch
            %398 = sbr.rel target = $region239
          $region244: #{tpu_custom_call.1} parent=236 // loop_exit
            _
        $region237: #{tpu_custom_call.1} parent=221 // pred_fallthru
          _
      $region222: #{tpu_custom_call.1} parent=5 // pred_fallthru
        _
      // Predicated region
      $region223: #{tpu_custom_call.1} parent=5 // pred_check
        %p373 = pneg %p369
      $region224: #{tpu_custom_call.1} parent=5 // pred_check_branch
        %375 = sbr.rel (%p373) target = $region226
      $region225: #{tpu_custom_call.1} parent=5 // pred_region
        %s376 = sshllo.u32 0, 1
        loop: start=0, step=1, limit=1
        $region227: #{tpu_custom_call.1} parent=225 // loop_pre_header
          _
        $region228: #{tpu_custom_call.1} parent=225 // loop_header
          %s378 = sphi 0, %s382
          %p379 = scmp.ge.s32.totalorder %s378, 1
          %s383 = sphi %s366, %s366
          %s384 = sphi %s367, %s367
        $region229: #{tpu_custom_call.1} parent=225 // loop_header_branch
          %381 = sbr.rel (%p379) target = $region233
        $region230: #{tpu_custom_call.1} parent=225 // loop_body
          %v385 = vld [vmem:[%s383] sm:%s376]
          %386 = vst [vmem:[%s384] sm:%s376] %v385
        $region231: #{tpu_custom_call.1} parent=225 // loop_footer
          %s382 = sadd.s32 1, %s378
        $region232: #{tpu_custom_call.1} parent=225 // loop_footer_branch
          %377 = sbr.rel target = $region228
        $region233: #{tpu_custom_call.1} parent=225 // loop_exit
          _
      $region226: #{tpu_custom_call.1} parent=5 // pred_fallthru
        _
      // Predicated region
      $region245: #{tpu_custom_call.1} parent=5 // pred_check
        _
      $region246: #{tpu_custom_call.1} parent=5 // pred_check_branch
        %410 = sbr.rel (0) target = $region248
      $region247: #{tpu_custom_call.1} parent=5 // pred_region
        %411 = vsyncadd %s79, 16
      $region248: #{tpu_custom_call.1} parent=5 // pred_fallthru
        _
      %s412 = sadd.s32 %s27, 4
      %s413 = sadd.s32 %s20, %s412
      %s414 = sld [smem:[#allocation6 + %s413]]
      %s415 = sld [smem:[#allocation7 + %s413]]
      %s416 = scalar_lea.vmem %s2, %s414
      %s417 = scalar_lea.vmem [#allocation2], %s412
      %p419 = scmp.lt.u32.totalorder 1, 8
      %p420 = pneg %p419
      // Predicated region
      $region249: #{tpu_custom_call.1} parent=5 // pred_check
        _
      $region250: #{tpu_custom_call.1} parent=5 // pred_check_branch
        %422 = sbr.rel (%p419) target = $region252
      $region251: #{tpu_custom_call.1} parent=5 // pred_region
        %s437 = sand.u32 1, 7
        %p438 = scmp.eq.s32.totalorder %s437, 0
        %p439 = pneg %p438
        // Predicated region
        $region264: #{tpu_custom_call.1} parent=251 // pred_check
          _
        $region265: #{tpu_custom_call.1} parent=251 // pred_check_branch
          %441 = sbr.rel (%p438) target = $region267
        $region266: #{tpu_custom_call.1} parent=251 // pred_region
          %s442 = sand.u32 1, 7
          %s443 = ssub.s32 1, %s442
          %s444 = scalar_lea.vmem %s416, %s443
          %s445 = ssub.s32 1, %s442
          %s446 = scalar_lea.vmem %s417, %s445 [#allocation2]
          %s447 = sshllo.u32 0, %s442
          loop: start=0, step=1, limit=1
          $region268: #{tpu_custom_call.1} parent=266 // loop_pre_header
            _
          $region269: #{tpu_custom_call.1} parent=266 // loop_header
            %s449 = sphi 0, %s453
            %p450 = scmp.ge.s32.totalorder %s449, 1
            %s454 = sphi %s444, %s444
            %s455 = sphi %s446, %s446
          $region270: #{tpu_custom_call.1} parent=266 // loop_header_branch
            %452 = sbr.rel (%p450) target = $region274
          $region271: #{tpu_custom_call.1} parent=266 // loop_body
            %v456 = vld [vmem:[%s454] sm:%s447]
            %457 = vst [vmem:[%s455] sm:%s447] %v456
          $region272: #{tpu_custom_call.1} parent=266 // loop_footer
            %s453 = sadd.s32 1, %s449
          $region273: #{tpu_custom_call.1} parent=266 // loop_footer_branch
            %448 = sbr.rel target = $region269
          $region274: #{tpu_custom_call.1} parent=266 // loop_exit
            _
        $region267: #{tpu_custom_call.1} parent=251 // pred_fallthru
          _
      $region252: #{tpu_custom_call.1} parent=5 // pred_fallthru
        _
      // Predicated region
      $region253: #{tpu_custom_call.1} parent=5 // pred_check
        %p423 = pneg %p419
      $region254: #{tpu_custom_call.1} parent=5 // pred_check_branch
        %425 = sbr.rel (%p423) target = $region256
      $region255: #{tpu_custom_call.1} parent=5 // pred_region
        %s426 = sshllo.u32 0, 1
        loop: start=0, step=1, limit=1
        $region257: #{tpu_custom_call.1} parent=255 // loop_pre_header
          _
        $region258: #{tpu_custom_call.1} parent=255 // loop_header
          %s428 = sphi 0, %s432
          %p429 = scmp.ge.s32.totalorder %s428, 1
          %s433 = sphi %s416, %s416
          %s434 = sphi %s417, %s417
        $region259: #{tpu_custom_call.1} parent=255 // loop_header_branch
          %431 = sbr.rel (%p429) target = $region263
        $region260: #{tpu_custom_call.1} parent=255 // loop_body
          %v435 = vld [vmem:[%s433] sm:%s426]
          %436 = vst [vmem:[%s434] sm:%s426] %v435
        $region261: #{tpu_custom_call.1} parent=255 // loop_footer
          %s432 = sadd.s32 1, %s428
        $region262: #{tpu_custom_call.1} parent=255 // loop_footer_branch
          %427 = sbr.rel target = $region258
        $region263: #{tpu_custom_call.1} parent=255 // loop_exit
          _
      $region256: #{tpu_custom_call.1} parent=5 // pred_fallthru
        _
      // Predicated region
      $region275: #{tpu_custom_call.1} parent=5 // pred_check
        _
      $region276: #{tpu_custom_call.1} parent=5 // pred_check_branch
        %460 = sbr.rel (0) target = $region278
      $region277: #{tpu_custom_call.1} parent=5 // pred_region
        %461 = vsyncadd [#allocation4], 16
      $region278: #{tpu_custom_call.1} parent=5 // pred_fallthru
        _
      %s462 = scalar_lea.vmem %s3, %s415
      %s463 = scalar_lea.vmem [#allocation3], %s412
      %p465 = scmp.lt.u32.totalorder 1, 8
      %p466 = pneg %p465
      // Predicated region
      $region279: #{tpu_custom_call.1} parent=5 // pred_check
        _
      $region280: #{tpu_custom_call.1} parent=5 // pred_check_branch
        %468 = sbr.rel (%p465) target = $region282
      $region281: #{tpu_custom_call.1} parent=5 // pred_region
        %s483 = sand.u32 1, 7
        %p484 = scmp.eq.s32.totalorder %s483, 0
        %p485 = pneg %p484
        // Predicated region
        $region294: #{tpu_custom_call.1} parent=281 // pred_check
          _
        $region295: #{tpu_custom_call.1} parent=281 // pred_check_branch
          %487 = sbr.rel (%p484) target = $region297
        $region296: #{tpu_custom_call.1} parent=281 // pred_region
          %s488 = sand.u32 1, 7
          %s489 = ssub.s32 1, %s488
          %s490 = scalar_lea.vmem %s462, %s489
          %s491 = ssub.s32 1, %s488
          %s492 = scalar_lea.vmem %s463, %s491 [#allocation3]
          %s493 = sshllo.u32 0, %s488
          loop: start=0, step=1, limit=1
          $region298: #{tpu_custom_call.1} parent=296 // loop_pre_header
            _
          $region299: #{tpu_custom_call.1} parent=296 // loop_header
            %s495 = sphi 0, %s499
            %p496 = scmp.ge.s32.totalorder %s495, 1
            %s500 = sphi %s490, %s490
            %s501 = sphi %s492, %s492
          $region300: #{tpu_custom_call.1} parent=296 // loop_header_branch
            %498 = sbr.rel (%p496) target = $region304
          $region301: #{tpu_custom_call.1} parent=296 // loop_body
            %v502 = vld [vmem:[%s500] sm:%s493]
            %503 = vst [vmem:[%s501] sm:%s493] %v502
          $region302: #{tpu_custom_call.1} parent=296 // loop_footer
            %s499 = sadd.s32 1, %s495
          $region303: #{tpu_custom_call.1} parent=296 // loop_footer_branch
            %494 = sbr.rel target = $region299
          $region304: #{tpu_custom_call.1} parent=296 // loop_exit
            _
        $region297: #{tpu_custom_call.1} parent=281 // pred_fallthru
          _
      $region282: #{tpu_custom_call.1} parent=5 // pred_fallthru
        _
      // Predicated region
      $region283: #{tpu_custom_call.1} parent=5 // pred_check
        %p469 = pneg %p465
      $region284: #{tpu_custom_call.1} parent=5 // pred_check_branch
        %471 = sbr.rel (%p469) target = $region286
      $region285: #{tpu_custom_call.1} parent=5 // pred_region
        %s472 = sshllo.u32 0, 1
        loop: start=0, step=1, limit=1
        $region287: #{tpu_custom_call.1} parent=285 // loop_pre_header
          _
        $region288: #{tpu_custom_call.1} parent=285 // loop_header
          %s474 = sphi 0, %s478
          %p475 = scmp.ge.s32.totalorder %s474, 1
          %s479 = sphi %s462, %s462
          %s480 = sphi %s463, %s463
        $region289: #{tpu_custom_call.1} parent=285 // loop_header_branch
          %477 = sbr.rel (%p475) target = $region293
        $region290: #{tpu_custom_call.1} parent=285 // loop_body
          %v481 = vld [vmem:[%s479] sm:%s472]
          %482 = vst [vmem:[%s480] sm:%s472] %v481
        $region291: #{tpu_custom_call.1} parent=285 // loop_footer
          %s478 = sadd.s32 1, %s474
        $region292: #{tpu_custom_call.1} parent=285 // loop_footer_branch
          %473 = sbr.rel target = $region288
        $region293: #{tpu_custom_call.1} parent=285 // loop_exit
          _
      $region286: #{tpu_custom_call.1} parent=5 // pred_fallthru
        _
      // Predicated region
      $region305: #{tpu_custom_call.1} parent=5 // pred_check
        _
      $region306: #{tpu_custom_call.1} parent=5 // pred_check_branch
        %506 = sbr.rel (0) target = $region308
      $region307: #{tpu_custom_call.1} parent=5 // pred_region
        %507 = vsyncadd %s79, 16
      $region308: #{tpu_custom_call.1} parent=5 // pred_fallthru
        _
      %s508 = sadd.s32 %s27, 5
      %s509 = sadd.s32 %s20, %s508
      %s510 = sld [smem:[#allocation6 + %s509]]
      %s511 = sld [smem:[#allocation7 + %s509]]
      %s512 = scalar_lea.vmem %s2, %s510
      %s513 = scalar_lea.vmem [#allocation2], %s508
      %p515 = scmp.lt.u32.totalorder 1, 8
      %p516 = pneg %p515
      // Predicated region
      $region309: #{tpu_custom_call.1} parent=5 // pred_check
        _
      $region310: #{tpu_custom_call.1} parent=5 // pred_check_branch
        %518 = sbr.rel (%p515) target = $region312
      $region311: #{tpu_custom_call.1} parent=5 // pred_region
        %s533 = sand.u32 1, 7
        %p534 = scmp.eq.s32.totalorder %s533, 0
        %p535 = pneg %p534
        // Predicated region
        $region324: #{tpu_custom_call.1} parent=311 // pred_check
          _
        $region325: #{tpu_custom_call.1} parent=311 // pred_check_branch
          %537 = sbr.rel (%p534) target = $region327
        $region326: #{tpu_custom_call.1} parent=311 // pred_region
          %s538 = sand.u32 1, 7
          %s539 = ssub.s32 1, %s538
          %s540 = scalar_lea.vmem %s512, %s539
          %s541 = ssub.s32 1, %s538
          %s542 = scalar_lea.vmem %s513, %s541 [#allocation2]
          %s543 = sshllo.u32 0, %s538
          loop: start=0, step=1, limit=1
          $region328: #{tpu_custom_call.1} parent=326 // loop_pre_header
            _
          $region329: #{tpu_custom_call.1} parent=326 // loop_header
            %s545 = sphi 0, %s549
            %p546 = scmp.ge.s32.totalorder %s545, 1
            %s550 = sphi %s540, %s540
            %s551 = sphi %s542, %s542
          $region330: #{tpu_custom_call.1} parent=326 // loop_header_branch
            %548 = sbr.rel (%p546) target = $region334
          $region331: #{tpu_custom_call.1} parent=326 // loop_body
            %v552 = vld [vmem:[%s550] sm:%s543]
            %553 = vst [vmem:[%s551] sm:%s543] %v552
          $region332: #{tpu_custom_call.1} parent=326 // loop_footer
            %s549 = sadd.s32 1, %s545
          $region333: #{tpu_custom_call.1} parent=326 // loop_footer_branch
            %544 = sbr.rel target = $region329
          $region334: #{tpu_custom_call.1} parent=326 // loop_exit
            _
        $region327: #{tpu_custom_call.1} parent=311 // pred_fallthru
          _
      $region312: #{tpu_custom_call.1} parent=5 // pred_fallthru
        _
      // Predicated region
      $region313: #{tpu_custom_call.1} parent=5 // pred_check
        %p519 = pneg %p515
      $region314: #{tpu_custom_call.1} parent=5 // pred_check_branch
        %521 = sbr.rel (%p519) target = $region316
      $region315: #{tpu_custom_call.1} parent=5 // pred_region
        %s522 = sshllo.u32 0, 1
        loop: start=0, step=1, limit=1
        $region317: #{tpu_custom_call.1} parent=315 // loop_pre_header
          _
        $region318: #{tpu_custom_call.1} parent=315 // loop_header
          %s524 = sphi 0, %s528
          %p525 = scmp.ge.s32.totalorder %s524, 1
          %s529 = sphi %s512, %s512
          %s530 = sphi %s513, %s513
        $region319: #{tpu_custom_call.1} parent=315 // loop_header_branch
          %527 = sbr.rel (%p525) target = $region323
        $region320: #{tpu_custom_call.1} parent=315 // loop_body
          %v531 = vld [vmem:[%s529] sm:%s522]
          %532 = vst [vmem:[%s530] sm:%s522] %v531
        $region321: #{tpu_custom_call.1} parent=315 // loop_footer
          %s528 = sadd.s32 1, %s524
        $region322: #{tpu_custom_call.1} parent=315 // loop_footer_branch
          %523 = sbr.rel target = $region318
        $region323: #{tpu_custom_call.1} parent=315 // loop_exit
          _
      $region316: #{tpu_custom_call.1} parent=5 // pred_fallthru
        _
      // Predicated region
      $region335: #{tpu_custom_call.1} parent=5 // pred_check
        _
      $region336: #{tpu_custom_call.1} parent=5 // pred_check_branch
        %556 = sbr.rel (0) target = $region338
      $region337: #{tpu_custom_call.1} parent=5 // pred_region
        %557 = vsyncadd [#allocation4], 16
      $region338: #{tpu_custom_call.1} parent=5 // pred_fallthru
        _
      %s558 = scalar_lea.vmem %s3, %s511
      %s559 = scalar_lea.vmem [#allocation3], %s508
      %p561 = scmp.lt.u32.totalorder 1, 8
      %p562 = pneg %p561
      // Predicated region
      $region339: #{tpu_custom_call.1} parent=5 // pred_check
        _
      $region340: #{tpu_custom_call.1} parent=5 // pred_check_branch
        %564 = sbr.rel (%p561) target = $region342
      $region341: #{tpu_custom_call.1} parent=5 // pred_region
        %s579 = sand.u32 1, 7
        %p580 = scmp.eq.s32.totalorder %s579, 0
        %p581 = pneg %p580
        // Predicated region
        $region354: #{tpu_custom_call.1} parent=341 // pred_check
          _
        $region355: #{tpu_custom_call.1} parent=341 // pred_check_branch
          %583 = sbr.rel (%p580) target = $region357
        $region356: #{tpu_custom_call.1} parent=341 // pred_region
          %s584 = sand.u32 1, 7
          %s585 = ssub.s32 1, %s584
          %s586 = scalar_lea.vmem %s558, %s585
          %s587 = ssub.s32 1, %s584
          %s588 = scalar_lea.vmem %s559, %s587 [#allocation3]
          %s589 = sshllo.u32 0, %s584
          loop: start=0, step=1, limit=1
          $region358: #{tpu_custom_call.1} parent=356 // loop_pre_header
            _
          $region359: #{tpu_custom_call.1} parent=356 // loop_header
            %s591 = sphi 0, %s595
            %p592 = scmp.ge.s32.totalorder %s591, 1
            %s596 = sphi %s586, %s586
            %s597 = sphi %s588, %s588
          $region360: #{tpu_custom_call.1} parent=356 // loop_header_branch
            %594 = sbr.rel (%p592) target = $region364
          $region361: #{tpu_custom_call.1} parent=356 // loop_body
            %v598 = vld [vmem:[%s596] sm:%s589]
            %599 = vst [vmem:[%s597] sm:%s589] %v598
          $region362: #{tpu_custom_call.1} parent=356 // loop_footer
            %s595 = sadd.s32 1, %s591
          $region363: #{tpu_custom_call.1} parent=356 // loop_footer_branch
            %590 = sbr.rel target = $region359
          $region364: #{tpu_custom_call.1} parent=356 // loop_exit
            _
        $region357: #{tpu_custom_call.1} parent=341 // pred_fallthru
          _
      $region342: #{tpu_custom_call.1} parent=5 // pred_fallthru
        _
      // Predicated region
      $region343: #{tpu_custom_call.1} parent=5 // pred_check
        %p565 = pneg %p561
      $region344: #{tpu_custom_call.1} parent=5 // pred_check_branch
        %567 = sbr.rel (%p565) target = $region346
      $region345: #{tpu_custom_call.1} parent=5 // pred_region
        %s568 = sshllo.u32 0, 1
        loop: start=0, step=1, limit=1
        $region347: #{tpu_custom_call.1} parent=345 // loop_pre_header
          _
        $region348: #{tpu_custom_call.1} parent=345 // loop_header
          %s570 = sphi 0, %s574
          %p571 = scmp.ge.s32.totalorder %s570, 1
          %s575 = sphi %s558, %s558
          %s576 = sphi %s559, %s559
        $region349: #{tpu_custom_call.1} parent=345 // loop_header_branch
          %573 = sbr.rel (%p571) target = $region353
        $region350: #{tpu_custom_call.1} parent=345 // loop_body
          %v577 = vld [vmem:[%s575] sm:%s568]
          %578 = vst [vmem:[%s576] sm:%s568] %v577
        $region351: #{tpu_custom_call.1} parent=345 // loop_footer
          %s574 = sadd.s32 1, %s570
        $region352: #{tpu_custom_call.1} parent=345 // loop_footer_branch
          %569 = sbr.rel target = $region348
        $region353: #{tpu_custom_call.1} parent=345 // loop_exit
          _
      $region346: #{tpu_custom_call.1} parent=5 // pred_fallthru
        _
      // Predicated region
      $region365: #{tpu_custom_call.1} parent=5 // pred_check
        _
      $region366: #{tpu_custom_call.1} parent=5 // pred_check_branch
        %602 = sbr.rel (0) target = $region368
      $region367: #{tpu_custom_call.1} parent=5 // pred_region
        %603 = vsyncadd %s79, 16
      $region368: #{tpu_custom_call.1} parent=5 // pred_fallthru
        _
      %s604 = sadd.s32 %s27, 6
      %s605 = sadd.s32 %s20, %s604
      %s606 = sld [smem:[#allocation6 + %s605]]
      %s607 = sld [smem:[#allocation7 + %s605]]
      %s608 = scalar_lea.vmem %s2, %s606
      %s609 = scalar_lea.vmem [#allocation2], %s604
      %p611 = scmp.lt.u32.totalorder 1, 8
      %p612 = pneg %p611
      // Predicated region
      $region369: #{tpu_custom_call.1} parent=5 // pred_check
        _
      $region370: #{tpu_custom_call.1} parent=5 // pred_check_branch
        %614 = sbr.rel (%p611) target = $region372
      $region371: #{tpu_custom_call.1} parent=5 // pred_region
        %s629 = sand.u32 1, 7
        %p630 = scmp.eq.s32.totalorder %s629, 0
        %p631 = pneg %p630
        // Predicated region
        $region384: #{tpu_custom_call.1} parent=371 // pred_check
          _
        $region385: #{tpu_custom_call.1} parent=371 // pred_check_branch
          %633 = sbr.rel (%p630) target = $region387
        $region386: #{tpu_custom_call.1} parent=371 // pred_region
          %s634 = sand.u32 1, 7
          %s635 = ssub.s32 1, %s634
          %s636 = scalar_lea.vmem %s608, %s635
          %s637 = ssub.s32 1, %s634
          %s638 = scalar_lea.vmem %s609, %s637 [#allocation2]
          %s639 = sshllo.u32 0, %s634
          loop: start=0, step=1, limit=1
          $region388: #{tpu_custom_call.1} parent=386 // loop_pre_header
            _
          $region389: #{tpu_custom_call.1} parent=386 // loop_header
            %s641 = sphi 0, %s645
            %p642 = scmp.ge.s32.totalorder %s641, 1
            %s646 = sphi %s636, %s636
            %s647 = sphi %s638, %s638
          $region390: #{tpu_custom_call.1} parent=386 // loop_header_branch
            %644 = sbr.rel (%p642) target = $region394
          $region391: #{tpu_custom_call.1} parent=386 // loop_body
            %v648 = vld [vmem:[%s646] sm:%s639]
            %649 = vst [vmem:[%s647] sm:%s639] %v648
          $region392: #{tpu_custom_call.1} parent=386 // loop_footer
            %s645 = sadd.s32 1, %s641
          $region393: #{tpu_custom_call.1} parent=386 // loop_footer_branch
            %640 = sbr.rel target = $region389
          $region394: #{tpu_custom_call.1} parent=386 // loop_exit
            _
        $region387: #{tpu_custom_call.1} parent=371 // pred_fallthru
          _
      $region372: #{tpu_custom_call.1} parent=5 // pred_fallthru
        _
      // Predicated region
      $region373: #{tpu_custom_call.1} parent=5 // pred_check
        %p615 = pneg %p611
      $region374: #{tpu_custom_call.1} parent=5 // pred_check_branch
        %617 = sbr.rel (%p615) target = $region376
      $region375: #{tpu_custom_call.1} parent=5 // pred_region
        %s618 = sshllo.u32 0, 1
        loop: start=0, step=1, limit=1
        $region377: #{tpu_custom_call.1} parent=375 // loop_pre_header
          _
        $region378: #{tpu_custom_call.1} parent=375 // loop_header
          %s620 = sphi 0, %s624
          %p621 = scmp.ge.s32.totalorder %s620, 1
          %s625 = sphi %s608, %s608
          %s626 = sphi %s609, %s609
        $region379: #{tpu_custom_call.1} parent=375 // loop_header_branch
          %623 = sbr.rel (%p621) target = $region383
        $region380: #{tpu_custom_call.1} parent=375 // loop_body
          %v627 = vld [vmem:[%s625] sm:%s618]
          %628 = vst [vmem:[%s626] sm:%s618] %v627
        $region381: #{tpu_custom_call.1} parent=375 // loop_footer
          %s624 = sadd.s32 1, %s620
        $region382: #{tpu_custom_call.1} parent=375 // loop_footer_branch
          %619 = sbr.rel target = $region378
        $region383: #{tpu_custom_call.1} parent=375 // loop_exit
          _
      $region376: #{tpu_custom_call.1} parent=5 // pred_fallthru
        _
      // Predicated region
      $region395: #{tpu_custom_call.1} parent=5 // pred_check
        _
      $region396: #{tpu_custom_call.1} parent=5 // pred_check_branch
        %652 = sbr.rel (0) target = $region398
      $region397: #{tpu_custom_call.1} parent=5 // pred_region
        %653 = vsyncadd [#allocation4], 16
      $region398: #{tpu_custom_call.1} parent=5 // pred_fallthru
        _
      %s654 = scalar_lea.vmem %s3, %s607
      %s655 = scalar_lea.vmem [#allocation3], %s604
      %p657 = scmp.lt.u32.totalorder 1, 8
      %p658 = pneg %p657
      // Predicated region
      $region399: #{tpu_custom_call.1} parent=5 // pred_check
        _
      $region400: #{tpu_custom_call.1} parent=5 // pred_check_branch
        %660 = sbr.rel (%p657) target = $region402
      $region401: #{tpu_custom_call.1} parent=5 // pred_region
        %s675 = sand.u32 1, 7
        %p676 = scmp.eq.s32.totalorder %s675, 0
        %p677 = pneg %p676
        // Predicated region
        $region414: #{tpu_custom_call.1} parent=401 // pred_check
          _
        $region415: #{tpu_custom_call.1} parent=401 // pred_check_branch
          %679 = sbr.rel (%p676) target = $region417
        $region416: #{tpu_custom_call.1} parent=401 // pred_region
          %s680 = sand.u32 1, 7
          %s681 = ssub.s32 1, %s680
          %s682 = scalar_lea.vmem %s654, %s681
          %s683 = ssub.s32 1, %s680
          %s684 = scalar_lea.vmem %s655, %s683 [#allocation3]
          %s685 = sshllo.u32 0, %s680
          loop: start=0, step=1, limit=1
          $region418: #{tpu_custom_call.1} parent=416 // loop_pre_header
            _
          $region419: #{tpu_custom_call.1} parent=416 // loop_header
            %s687 = sphi 0, %s691
            %p688 = scmp.ge.s32.totalorder %s687, 1
            %s692 = sphi %s682, %s682
            %s693 = sphi %s684, %s684
          $region420: #{tpu_custom_call.1} parent=416 // loop_header_branch
            %690 = sbr.rel (%p688) target = $region424
          $region421: #{tpu_custom_call.1} parent=416 // loop_body
            %v694 = vld [vmem:[%s692] sm:%s685]
            %695 = vst [vmem:[%s693] sm:%s685] %v694
          $region422: #{tpu_custom_call.1} parent=416 // loop_footer
            %s691 = sadd.s32 1, %s687
          $region423: #{tpu_custom_call.1} parent=416 // loop_footer_branch
            %686 = sbr.rel target = $region419
          $region424: #{tpu_custom_call.1} parent=416 // loop_exit
            _
        $region417: #{tpu_custom_call.1} parent=401 // pred_fallthru
          _
      $region402: #{tpu_custom_call.1} parent=5 // pred_fallthru
        _
      // Predicated region
      $region403: #{tpu_custom_call.1} parent=5 // pred_check
        %p661 = pneg %p657
      $region404: #{tpu_custom_call.1} parent=5 // pred_check_branch
        %663 = sbr.rel (%p661) target = $region406
      $region405: #{tpu_custom_call.1} parent=5 // pred_region
        %s664 = sshllo.u32 0, 1
        loop: start=0, step=1, limit=1
        $region407: #{tpu_custom_call.1} parent=405 // loop_pre_header
          _
        $region408: #{tpu_custom_call.1} parent=405 // loop_header
          %s666 = sphi 0, %s670
          %p667 = scmp.ge.s32.totalorder %s666, 1
          %s671 = sphi %s654, %s654
          %s672 = sphi %s655, %s655
        $region409: #{tpu_custom_call.1} parent=405 // loop_header_branch
          %669 = sbr.rel (%p667) target = $region413
        $region410: #{tpu_custom_call.1} parent=405 // loop_body
          %v673 = vld [vmem:[%s671] sm:%s664]
          %674 = vst [vmem:[%s672] sm:%s664] %v673
        $region411: #{tpu_custom_call.1} parent=405 // loop_footer
          %s670 = sadd.s32 1, %s666
        $region412: #{tpu_custom_call.1} parent=405 // loop_footer_branch
          %665 = sbr.rel target = $region408
        $region413: #{tpu_custom_call.1} parent=405 // loop_exit
          _
      $region406: #{tpu_custom_call.1} parent=5 // pred_fallthru
        _
      // Predicated region
      $region425: #{tpu_custom_call.1} parent=5 // pred_check
        _
      $region426: #{tpu_custom_call.1} parent=5 // pred_check_branch
        %698 = sbr.rel (0) target = $region428
      $region427: #{tpu_custom_call.1} parent=5 // pred_region
        %699 = vsyncadd %s79, 16
      $region428: #{tpu_custom_call.1} parent=5 // pred_fallthru
        _
      %s700 = sadd.s32 %s27, 7
      %s701 = sadd.s32 %s20, %s700
      %s702 = sld [smem:[#allocation6 + %s701]]
      %s703 = sld [smem:[#allocation7 + %s701]]
      %s704 = scalar_lea.vmem %s2, %s702
      %s705 = scalar_lea.vmem [#allocation2], %s700
      %p707 = scmp.lt.u32.totalorder 1, 8
      %p708 = pneg %p707
      // Predicated region
      $region429: #{tpu_custom_call.1} parent=5 // pred_check
        _
      $region430: #{tpu_custom_call.1} parent=5 // pred_check_branch
        %710 = sbr.rel (%p707) target = $region432
      $region431: #{tpu_custom_call.1} parent=5 // pred_region
        %s725 = sand.u32 1, 7
        %p726 = scmp.eq.s32.totalorder %s725, 0
        %p727 = pneg %p726
        // Predicated region
        $region444: #{tpu_custom_call.1} parent=431 // pred_check
          _
        $region445: #{tpu_custom_call.1} parent=431 // pred_check_branch
          %729 = sbr.rel (%p726) target = $region447
        $region446: #{tpu_custom_call.1} parent=431 // pred_region
          %s730 = sand.u32 1, 7
          %s731 = ssub.s32 1, %s730
          %s732 = scalar_lea.vmem %s704, %s731
          %s733 = ssub.s32 1, %s730
          %s734 = scalar_lea.vmem %s705, %s733 [#allocation2]
          %s735 = sshllo.u32 0, %s730
          loop: start=0, step=1, limit=1
          $region448: #{tpu_custom_call.1} parent=446 // loop_pre_header
            _
          $region449: #{tpu_custom_call.1} parent=446 // loop_header
            %s737 = sphi 0, %s741
            %p738 = scmp.ge.s32.totalorder %s737, 1
            %s742 = sphi %s732, %s732
            %s743 = sphi %s734, %s734
          $region450: #{tpu_custom_call.1} parent=446 // loop_header_branch
            %740 = sbr.rel (%p738) target = $region454
          $region451: #{tpu_custom_call.1} parent=446 // loop_body
            %v744 = vld [vmem:[%s742] sm:%s735]
            %745 = vst [vmem:[%s743] sm:%s735] %v744
          $region452: #{tpu_custom_call.1} parent=446 // loop_footer
            %s741 = sadd.s32 1, %s737
          $region453: #{tpu_custom_call.1} parent=446 // loop_footer_branch
            %736 = sbr.rel target = $region449
          $region454: #{tpu_custom_call.1} parent=446 // loop_exit
            _
        $region447: #{tpu_custom_call.1} parent=431 // pred_fallthru
          _
      $region432: #{tpu_custom_call.1} parent=5 // pred_fallthru
        _
      // Predicated region
      $region433: #{tpu_custom_call.1} parent=5 // pred_check
        %p711 = pneg %p707
      $region434: #{tpu_custom_call.1} parent=5 // pred_check_branch
        %713 = sbr.rel (%p711) target = $region436
      $region435: #{tpu_custom_call.1} parent=5 // pred_region
        %s714 = sshllo.u32 0, 1
        loop: start=0, step=1, limit=1
        $region437: #{tpu_custom_call.1} parent=435 // loop_pre_header
          _
        $region438: #{tpu_custom_call.1} parent=435 // loop_header
          %s716 = sphi 0, %s720
          %p717 = scmp.ge.s32.totalorder %s716, 1
          %s721 = sphi %s704, %s704
          %s722 = sphi %s705, %s705
        $region439: #{tpu_custom_call.1} parent=435 // loop_header_branch
          %719 = sbr.rel (%p717) target = $region443
        $region440: #{tpu_custom_call.1} parent=435 // loop_body
          %v723 = vld [vmem:[%s721] sm:%s714]
          %724 = vst [vmem:[%s722] sm:%s714] %v723
        $region441: #{tpu_custom_call.1} parent=435 // loop_footer
          %s720 = sadd.s32 1, %s716
        $region442: #{tpu_custom_call.1} parent=435 // loop_footer_branch
          %715 = sbr.rel target = $region438
        $region443: #{tpu_custom_call.1} parent=435 // loop_exit
          _
      $region436: #{tpu_custom_call.1} parent=5 // pred_fallthru
        _
      // Predicated region
      $region455: #{tpu_custom_call.1} parent=5 // pred_check
        _
      $region456: #{tpu_custom_call.1} parent=5 // pred_check_branch
        %748 = sbr.rel (0) target = $region458
      $region457: #{tpu_custom_call.1} parent=5 // pred_region
        %749 = vsyncadd [#allocation4], 16
      $region458: #{tpu_custom_call.1} parent=5 // pred_fallthru
        _
      %s750 = scalar_lea.vmem %s3, %s703
      %s751 = scalar_lea.vmem [#allocation3], %s700
      %p753 = scmp.lt.u32.totalorder 1, 8
      %p754 = pneg %p753
      // Predicated region
      $region459: #{tpu_custom_call.1} parent=5 // pred_check
        _
      $region460: #{tpu_custom_call.1} parent=5 // pred_check_branch
        %756 = sbr.rel (%p753) target = $region462
      $region461: #{tpu_custom_call.1} parent=5 // pred_region
        %s771 = sand.u32 1, 7
        %p772 = scmp.eq.s32.totalorder %s771, 0
        %p773 = pneg %p772
        // Predicated region
        $region474: #{tpu_custom_call.1} parent=461 // pred_check
          _
        $region475: #{tpu_custom_call.1} parent=461 // pred_check_branch
          %775 = sbr.rel (%p772) target = $region477
        $region476: #{tpu_custom_call.1} parent=461 // pred_region
          %s776 = sand.u32 1, 7
          %s777 = ssub.s32 1, %s776
          %s778 = scalar_lea.vmem %s750, %s777
          %s779 = ssub.s32 1, %s776
          %s780 = scalar_lea.vmem %s751, %s779 [#allocation3]
          %s781 = sshllo.u32 0, %s776
          loop: start=0, step=1, limit=1
          $region478: #{tpu_custom_call.1} parent=476 // loop_pre_header
            _
          $region479: #{tpu_custom_call.1} parent=476 // loop_header
            %s783 = sphi 0, %s787
            %p784 = scmp.ge.s32.totalorder %s783, 1
            %s788 = sphi %s778, %s778
            %s789 = sphi %s780, %s780
          $region480: #{tpu_custom_call.1} parent=476 // loop_header_branch
            %786 = sbr.rel (%p784) target = $region484
          $region481: #{tpu_custom_call.1} parent=476 // loop_body
            %v790 = vld [vmem:[%s788] sm:%s781]
            %791 = vst [vmem:[%s789] sm:%s781] %v790
          $region482: #{tpu_custom_call.1} parent=476 // loop_footer
            %s787 = sadd.s32 1, %s783
          $region483: #{tpu_custom_call.1} parent=476 // loop_footer_branch
            %782 = sbr.rel target = $region479
          $region484: #{tpu_custom_call.1} parent=476 // loop_exit
            _
        $region477: #{tpu_custom_call.1} parent=461 // pred_fallthru
          _
      $region462: #{tpu_custom_call.1} parent=5 // pred_fallthru
        _
      // Predicated region
      $region463: #{tpu_custom_call.1} parent=5 // pred_check
        %p757 = pneg %p753
      $region464: #{tpu_custom_call.1} parent=5 // pred_check_branch
        %759 = sbr.rel (%p757) target = $region466
      $region465: #{tpu_custom_call.1} parent=5 // pred_region
        %s760 = sshllo.u32 0, 1
        loop: start=0, step=1, limit=1
        $region467: #{tpu_custom_call.1} parent=465 // loop_pre_header
          _
        $region468: #{tpu_custom_call.1} parent=465 // loop_header
          %s762 = sphi 0, %s766
          %p763 = scmp.ge.s32.totalorder %s762, 1
          %s767 = sphi %s750, %s750
          %s768 = sphi %s751, %s751
        $region469: #{tpu_custom_call.1} parent=465 // loop_header_branch
          %765 = sbr.rel (%p763) target = $region473
        $region470: #{tpu_custom_call.1} parent=465 // loop_body
          %v769 = vld [vmem:[%s767] sm:%s760]
          %770 = vst [vmem:[%s768] sm:%s760] %v769
        $region471: #{tpu_custom_call.1} parent=465 // loop_footer
          %s766 = sadd.s32 1, %s762
        $region472: #{tpu_custom_call.1} parent=465 // loop_footer_branch
          %761 = sbr.rel target = $region468
        $region473: #{tpu_custom_call.1} parent=465 // loop_exit
          _
      $region466: #{tpu_custom_call.1} parent=5 // pred_fallthru
        _
      // Predicated region
      $region485: #{tpu_custom_call.1} parent=5 // pred_check
        _
      $region486: #{tpu_custom_call.1} parent=5 // pred_check_branch
        %794 = sbr.rel (0) target = $region488
      $region487: #{tpu_custom_call.1} parent=5 // pred_region
        %795 = vsyncadd %s79, 16
      $region488: #{tpu_custom_call.1} parent=5 // pred_fallthru
        _
    $region6: #{tpu_custom_call.1} parent=1 // loop_footer
      %s26 = sadd.s32 1, %s22
    $region7: #{tpu_custom_call.1} parent=1 // loop_footer_branch
      %21 = sbr.rel target = $region3
    $region8: #{tpu_custom_call.1} parent=1 // loop_exit
      _
    %s796 = smul.u32 128, 1
    %s797 = sshll.u32 %s796, 4
    %798 = dma.done [#allocation4], %s797
    %s799 = scalar_lea.sflag [#allocation4], 1
    %s800 = sshll.u32 %s796, 4
    %801 = dma.done %s799, %s800
    %v802 = vld [vmem:[#allocation2] sm:$0xff]
    %v803 = vld [vmem:[#allocation2 + $0x8] sm:$0xff]
    %v804 = vld [vmem:[#allocation2 + $0x10] sm:$0xff]
    %v805 = vld [vmem:[#allocation2 + $0x18] sm:$0xff]
    %v806 = vld [vmem:[#allocation2 + $0x20] sm:$0xff]
    %v807 = vld [vmem:[#allocation2 + $0x28] sm:$0xff]
    %v808 = vld [vmem:[#allocation2 + $0x30] sm:$0xff]
    %v809 = vld [vmem:[#allocation2 + $0x38] sm:$0xff]
    %v810 = vld [vmem:[#allocation2 + $0x40] sm:$0xff]
    %v811 = vld [vmem:[#allocation2 + $0x48] sm:$0xff]
    %v812 = vld [vmem:[#allocation2 + $0x50] sm:$0xff]
    %v813 = vld [vmem:[#allocation2 + $0x58] sm:$0xff]
    %v814 = vld [vmem:[#allocation2 + $0x60] sm:$0xff]
    %v815 = vld [vmem:[#allocation2 + $0x68] sm:$0xff]
    %v816 = vld [vmem:[#allocation2 + $0x70] sm:$0xff]
    %v817 = vld [vmem:[#allocation2 + $0x78] sm:$0xff]
    %v818 = vld [vmem:[#allocation3] sm:$0xff]
    %v819 = vld [vmem:[#allocation3 + $0x8] sm:$0xff]
    %v820 = vld [vmem:[#allocation3 + $0x10] sm:$0xff]
    %v821 = vld [vmem:[#allocation3 + $0x18] sm:$0xff]
    %v822 = vld [vmem:[#allocation3 + $0x20] sm:$0xff]
    %v823 = vld [vmem:[#allocation3 + $0x28] sm:$0xff]
    %v824 = vld [vmem:[#allocation3 + $0x30] sm:$0xff]
    %v825 = vld [vmem:[#allocation3 + $0x38] sm:$0xff]
    %v826 = vld [vmem:[#allocation3 + $0x40] sm:$0xff]
    %v827 = vld [vmem:[#allocation3 + $0x48] sm:$0xff]
    %v828 = vld [vmem:[#allocation3 + $0x50] sm:$0xff]
    %v829 = vld [vmem:[#allocation3 + $0x58] sm:$0xff]
    %v830 = vld [vmem:[#allocation3 + $0x60] sm:$0xff]
    %v831 = vld [vmem:[#allocation3 + $0x68] sm:$0xff]
    %v832 = vld [vmem:[#allocation3 + $0x70] sm:$0xff]
    %v833 = vld [vmem:[#allocation3 + $0x78] sm:$0xff]
    %v834 = vmul.f32 %v802, %v818
    %v835 = vmul.f32 %v803, %v819
    %v836 = vmul.f32 %v804, %v820
    %v837 = vmul.f32 %v805, %v821
    %v838 = vmul.f32 %v806, %v822
    %v839 = vmul.f32 %v807, %v823
    %v840 = vmul.f32 %v808, %v824
    %v841 = vmul.f32 %v809, %v825
    %v842 = vmul.f32 %v810, %v826
    %v843 = vmul.f32 %v811, %v827
    %v844 = vmul.f32 %v812, %v828
    %v845 = vmul.f32 %v813, %v829
    %v846 = vmul.f32 %v814, %v830
    %v847 = vmul.f32 %v815, %v831
    %v848 = vmul.f32 %v816, %v832
    %v849 = vmul.f32 %v817, %v833
    %vm850 = vcmask 261120
    %v851 = vsel %vm850, %v834, 0.0
    %852 = vadd.xlane.f32.xlu0 %v851
    %v853 = vpop.xlane.xlu0 %852
    %v854 = vsel %vm850, %v835, 0.0
    %855 = vadd.xlane.f32.xlu0 %v854
    %v856 = vpop.xlane.xlu0 %855
    %v857 = vsel %vm850, %v836, 0.0
    %858 = vadd.xlane.f32.xlu0 %v857
    %v859 = vpop.xlane.xlu0 %858
    %v860 = vsel %vm850, %v837, 0.0
    %861 = vadd.xlane.f32.xlu0 %v860
    %v862 = vpop.xlane.xlu0 %861
    %v863 = vsel %vm850, %v838, 0.0
    %864 = vadd.xlane.f32.xlu0 %v863
    %v865 = vpop.xlane.xlu0 %864
    %v866 = vsel %vm850, %v839, 0.0
    %867 = vadd.xlane.f32.xlu0 %v866
    %v868 = vpop.xlane.xlu0 %867
    %v869 = vsel %vm850, %v840, 0.0
    %870 = vadd.xlane.f32.xlu0 %v869
    %v871 = vpop.xlane.xlu0 %870
    %v872 = vsel %vm850, %v841, 0.0
    %873 = vadd.xlane.f32.xlu0 %v872
    %v874 = vpop.xlane.xlu0 %873
    %v875 = vsel %vm850, %v842, 0.0
    %876 = vadd.xlane.f32.xlu0 %v875
    %v877 = vpop.xlane.xlu0 %876
    %v878 = vsel %vm850, %v843, 0.0
    %879 = vadd.xlane.f32.xlu0 %v878
    %v880 = vpop.xlane.xlu0 %879
    %v881 = vsel %vm850, %v844, 0.0
    %882 = vadd.xlane.f32.xlu0 %v881
    %v883 = vpop.xlane.xlu0 %882
    %v884 = vsel %vm850, %v845, 0.0
    %885 = vadd.xlane.f32.xlu0 %v884
    %v886 = vpop.xlane.xlu0 %885
    %v887 = vsel %vm850, %v846, 0.0
    %888 = vadd.xlane.f32.xlu0 %v887
    %v889 = vpop.xlane.xlu0 %888
    %v890 = vsel %vm850, %v847, 0.0
    %891 = vadd.xlane.f32.xlu0 %v890
    %v892 = vpop.xlane.xlu0 %891
    %v893 = vsel %vm850, %v848, 0.0
    %894 = vadd.xlane.f32.xlu0 %v893
    %v895 = vpop.xlane.xlu0 %894
    %v896 = vsel %vm850, %v849, 0.0
    %897 = vadd.xlane.f32.xlu0 %v896
    %v898 = vpop.xlane.xlu0 %897
    %v915 = vlaneseq
    %v916 = vand.u32 %v915, 127
    %v917 = vlaneseq
    %v918 = vshrl.u32 %v917, 7
    %v919 = vsub.s32 %v916, %v918
    %v920 = vrot.slane %v853, %v919
    %v921 = vadd.s32 %v916, 4294967288
    %v922 = vlaneseq
    %v923 = vshrl.u32 %v922, 7
    %v924 = vsub.s32 %v921, %v923
    %v925 = vrot.slane %v856, %v924
    %vm926 = vcmask 130112
    %v927 = vsel %vm926, %v925, %v920
    %v928 = vadd.s32 %v916, 4294967280
    %v929 = vlaneseq
    %v930 = vshrl.u32 %v929, 7
    %v931 = vsub.s32 %v928, %v930
    %v932 = vrot.slane %v859, %v931
    %vm933 = vcmask 195712
    %v934 = vsel %vm933, %v932, %v927
    %v935 = vadd.s32 %v916, 4294967272
    %v936 = vlaneseq
    %v937 = vshrl.u32 %v936, 7
    %v938 = vsub.s32 %v935, %v937
    %v939 = vrot.slane %v862, %v938
    %vm940 = vcmask 261312
    %v941 = vsel %vm940, %v939, %v934
    %v942 = vadd.s32 %v916, 4294967264
    %v943 = vlaneseq
    %v944 = vshrl.u32 %v943, 7
    %v945 = vsub.s32 %v942, %v944
    %v946 = vrot.slane %v865, %v945
    %vm947 = vcmask 326912
    %v948 = vsel %vm947, %v946, %v941
    %v949 = vadd.s32 %v916, 4294967256
    %v950 = vlaneseq
    %v951 = vshrl.u32 %v950, 7
    %v952 = vsub.s32 %v949, %v951
    %v953 = vrot.slane %v868, %v952
    %vm954 = vcmask 392512
    %v955 = vsel %vm954, %v953, %v948
    %v956 = vadd.s32 %v916, 4294967248
    %v957 = vlaneseq
    %v958 = vshrl.u32 %v957, 7
    %v959 = vsub.s32 %v956, %v958
    %v960 = vrot.slane %v871, %v959
    %vm961 = vcmask 458112
    %v962 = vsel %vm961, %v960, %v955
    %v963 = vadd.s32 %v916, 4294967240
    %v964 = vlaneseq
    %v965 = vshrl.u32 %v964, 7
    %v966 = vsub.s32 %v963, %v965
    %v967 = vrot.slane %v874, %v966
    %vm968 = vcmask 523712
    %v969 = vsel %vm968, %v967, %v962
    %v970 = vadd.s32 %v916, 4294967232
    %v971 = vlaneseq
    %v972 = vshrl.u32 %v971, 7
    %v973 = vsub.s32 %v970, %v972
    %v974 = vrot.slane %v877, %v973
    %vm975 = vcmask 589312
    %v976 = vsel %vm975, %v974, %v969
    %v977 = vadd.s32 %v916, 4294967224
    %v978 = vlaneseq
    %v979 = vshrl.u32 %v978, 7
    %v980 = vsub.s32 %v977, %v979
    %v981 = vrot.slane %v880, %v980
    %vm982 = vcmask 654912
    %v983 = vsel %vm982, %v981, %v976
    %v984 = vadd.s32 %v916, 4294967216
    %v985 = vlaneseq
    %v986 = vshrl.u32 %v985, 7
    %v987 = vsub.s32 %v984, %v986
    %v988 = vrot.slane %v883, %v987
    %vm989 = vcmask 720512
    %v990 = vsel %vm989, %v988, %v983
    %v991 = vadd.s32 %v916, 4294967208
    %v992 = vlaneseq
    %v993 = vshrl.u32 %v992, 7
    %v994 = vsub.s32 %v991, %v993
    %v995 = vrot.slane %v886, %v994
    %vm996 = vcmask 786112
    %v997 = vsel %vm996, %v995, %v990
    %v998 = vadd.s32 %v916, 4294967200
    %v999 = vlaneseq
    %v1000 = vshrl.u32 %v999, 7
    %v1001 = vsub.s32 %v998, %v1000
    %v1002 = vrot.slane %v889, %v1001
    %vm1003 = vcmask 851712
    %v1004 = vsel %vm1003, %v1002, %v997
    %v1005 = vadd.s32 %v916, 4294967192
    %v1006 = vlaneseq
    %v1007 = vshrl.u32 %v1006, 7
    %v1008 = vsub.s32 %v1005, %v1007
    %v1009 = vrot.slane %v892, %v1008
    %vm1010 = vcmask 917312
    %v1011 = vsel %vm1010, %v1009, %v1004
    %v1012 = vadd.s32 %v916, 4294967184
    %v1013 = vlaneseq
    %v1014 = vshrl.u32 %v1013, 7
    %v1015 = vsub.s32 %v1012, %v1014
    %v1016 = vrot.slane %v895, %v1015
    %vm1017 = vcmask 982912
    %v1018 = vsel %vm1017, %v1016, %v1011
    %v1019 = vadd.s32 %v916, 4294967176
    %v1020 = vlaneseq
    %v1021 = vshrl.u32 %v1020, 7
    %v1022 = vsub.s32 %v1019, %v1021
    %v1023 = vrot.slane %v898, %v1022
    %vm1024 = vcmask 1048512
    %v1025 = vsel %vm1024, %v1023, %v1018
    %1027 = vst [vmem:[#allocation8] sm:$0x1] %v1025
    // Predicated region
    $region489: #{tpu_custom_call.1} parent=1 // pred_check
      _
    $region490: #{tpu_custom_call.1} parent=1 // pred_check_branch
      %1029 = sbr.rel (0) target = $region492
    $region491: #{tpu_custom_call.1} parent=1 // pred_region
      %s1031 = ssub.s32 16, 16
      %1032 = vsyncadd [#allocation9], %s1031
      %s1034 = sshll.u32 [#allocation8], 4
      %s1035 = int_to_ptr.vmem [resolvable:$true] %s1034
      %1037 = dma.vmem_to_hbm [thread:$0]  %s1035, 16, %s4, [#allocation9]
    $region492: #{tpu_custom_call.1} parent=1 // pred_fallthru
      _
    // Predicated region
    $region493: #{tpu_custom_call.1} parent=1 // pred_check
      _
    $region494: #{tpu_custom_call.1} parent=1 // pred_check_branch
      %1039 = sbr.rel (0) target = $region496
    $region495: #{tpu_custom_call.1} parent=1 // pred_region
      %1040 = dma.done [#allocation9], 16
    $region496: #{tpu_custom_call.1} parent=1 // pred_fallthru
      _
    %1041 = vsyncpa [#allocation9], 1
  %1042 = vsyncmov [#allocation4]
  %s1043 = vpop.sfrf %1042
  %p1044 = scmp.eq.s32.totalorder %s1043, 0
  %p1045 = pneg %p1044
  %1047 = shalt.err (%p1045)
  %s1048 = scalar_lea.sflag [#allocation4], 1
  %1049 = vsyncmov %s1048
  %s1050 = vpop.sfrf %1049
  %p1051 = scmp.eq.s32.totalorder %s1050, 0
  %p1052 = pneg %p1051
  %1054 = shalt.err (%p1052)

</llo_original>
